<compile_context>
chip_gen: v6e
topology: v6e:2x2x1
jax: 0.10.0
libtpu: 0.0.40
codegen_flags: <defaults>
</compile_context>

<pallas_src>
import functools

import numpy as np
import jax
import jax.numpy as jnp
from jax.experimental import pallas as pl
from jax.experimental.pallas import tpu as pltpu

_LANE = 128
_SUBLANE = 8
_NSPLIT = 3   # bf16 hi/mid/lo split of the f32 table (reconstructs ~1 ulp)


def _round_up(v, mult):
    return ((v + mult - 1) // mult) * mult


def _ceil_div(a, b):
    return -(-a // b)


# ---------------------------------------------------------------------------
# Fused path: VMEM-resident table + in-kernel one-hot MXU gather.
# ---------------------------------------------------------------------------
def _ffm_fused_kernel(pairs, m, tab_ref, xt_ref, out_ref):
    # tab_ref: (NSPLIT*m, k, n_pad) bf16  -- resident (constant block index)
    # xt_ref : (m, Bt) int32              -- x transposed, batch on lanes
    # out_ref: (1, Bt) float32            -- lane-dense probabilities
    k = tab_ref.shape[1]
    n_pad = tab_ref.shape[2]
    bt = out_ref.shape[1]
    nsplit = tab_ref.shape[0] // m

    # Hoisted iota; reused by every one-hot build.
    iota_v = jax.lax.broadcasted_iota(jnp.int32, (n_pad, bt), 0)

    def gather(x_field, emb_field):
        # (k, Bt) with [c, b] = field_embeddings[x[b, x_field], emb_field, c]
        eq = iota_v == xt_ref[x_field:x_field + 1, :]          # (n_pad, Bt)
        oh = jnp.where(eq, 1.0, 0.0).astype(jnp.bfloat16)      # exact 0/1
        e = jnp.zeros((k, bt), jnp.float32)
        for s in range(nsplit):
            e = e + jnp.dot(tab_ref[s * m + emb_field], oh,
                            preferred_element_type=jnp.float32)
        return e

    acc = jnp.zeros((k, bt), jnp.float32)
    for fi, fj in pairs:
        acc = acc + gather(fi, fj) * gather(fj, fi)

    inter = jnp.sum(acc, axis=0, keepdims=True)                # (1, Bt)
    out_ref[...] = 1.0 / (1.0 + jnp.exp(-inter))


def _ffm_forward_fused(x, field_embeddings, i1, i2, batch_tile):
    n, m, k = field_embeddings.shape
    B = x.shape[0]
    n_pad = _round_up(n, _LANE)

    # Transposed table (m, k, n_pad), split into bf16 hi/mid/lo so the
    # native-bf16 MXU gather reconstructs the f32 values to ~1 ulp.
    tab = jnp.transpose(field_embeddings.astype(jnp.float32), (1, 2, 0))
    tab = jnp.pad(tab, ((0, 0), (0, 0), (0, n_pad - n)))
    splits = []
    rem = tab
    for _ in range(_NSPLIT):
        part = rem.astype(jnp.bfloat16)
        splits.append(part)
        rem = rem - part.astype(jnp.float32)
    tab_stack = jnp.concatenate(splits, axis=0)        # (NSPLIT*m, k, n_pad)

    # Batch tile: multiple of 128 lanes, aim for >=4 grid steps (keeps both
    # v7x TensorCores busy), bound the (n_pad, Bt) one-hot working set.
    oh_cap = max(_LANE, (2 * 1024 * 1024 // (2 * n_pad)) // _LANE * _LANE)
    bt = _round_up(_ceil_div(B, 4), _LANE)
    bt = min(bt, _round_up(int(batch_tile), _LANE), oh_cap)
    bt = max(bt, _LANE)
    Bp = _round_up(B, bt)

    xt = jnp.pad(x, ((0, Bp - B), (0, 0))).T           # (m, Bp) int32

    pairs = tuple((int(a), int(b)) for a, b in zip(i1, i2))
    kernel = functools.partial(_ffm_fused_kernel, pairs, m)

    out = pl.pallas_call(
        kernel,
        out_shape=jax.ShapeDtypeStruct((1, Bp), jnp.float32),
        grid=(Bp // bt,),
        in_specs=[
            # Whole split table each step; constant block index -> fetched once.
            pl.BlockSpec((_NSPLIT * m, k, n_pad), lambda i: (0, 0, 0)),
            # Only the int32 indices stream with the batch.
            pl.BlockSpec((m, bt), lambda i: (0, i)),
        ],
        out_specs=pl.BlockSpec((1, bt), lambda i: (0, i)),
        compiler_params=pltpu.CompilerParams(
            dimension_semantics=("parallel",),
        ),
    )(tab_stack, xt)
    return out[0, :B]


# ---------------------------------------------------------------------------
# Fallback path (huge vocabularies): XLA gather -> streaming multiply-reduce.
# ---------------------------------------------------------------------------
def _ffm_pairs_kernel(e1_ref, e2_ref, out_ref):
    prod = e1_ref[...] * e2_ref[...]
    inter = jnp.sum(prod, axis=-1, keepdims=True)              # (Bt, 1)
    out_ref[...] = 1.0 / (1.0 + jnp.exp(-inter))


def _ffm_forward_pairs(x, field_embeddings, i1, i2, batch_tile):
    # TODO(synk): for very large n the data-dependent gather stays in XLA;
    # fusing it would need per-row scalar-driven DMAs, slower than this
    # bandwidth-bound path.  Kept in f32 to preserve exact forward semantics.
    n, m, k = field_embeddings.shape
    B = x.shape[0]
    P = int(i1.shape[0])
    feat = P * k

    # Tile sizing: 2 inputs x 2 pipeline buffers under ~12 MiB (safe within
    # the default scoped-VMEM limit on v5e/v6e/v7x).
    vmem_budget = 12 * 1024 * 1024
    bt_cap = max(_SUBLANE,
                 (vmem_budget // (4 * feat * 4)) // _SUBLANE * _SUBLANE)
    Bt = min(int(batch_tile), bt_cap, _round_up(B, _SUBLANE))
    Bt = max(_SUBLANE, (Bt // _SUBLANE) * _SUBLANE)
    Bp = _round_up(B, Bt)

    # Pad the cheap int32 index arrays, not the gathered embeddings.
    flat1 = x[:, i1] * m + jnp.asarray(i2, jnp.int32)          # (B, P)
    flat2 = x[:, i2] * m + jnp.asarray(i1, jnp.int32)
    flat1 = jnp.pad(flat1, ((0, Bp - B), (0, 0)))
    flat2 = jnp.pad(flat2, ((0, Bp - B), (0, 0)))

    table = field_embeddings.reshape(n * m, k)                 # (n*m, k)
    e1 = table[flat1].reshape(Bp, feat)
    e2 = table[flat2].reshape(Bp, feat)

    out = pl.pallas_call(
        _ffm_pairs_kernel,
        out_shape=jax.ShapeDtypeStruct((Bp, 1), jnp.float32),
        grid=(Bp // Bt,),
        in_specs=[
            # Full-extent feature block (feat == full array dim, no 128 pad).
            pl.BlockSpec((Bt, feat), lambda i: (i, 0)),
            pl.BlockSpec((Bt, feat), lambda i: (i, 0)),
        ],
        out_specs=pl.BlockSpec((Bt, 1), lambda i: (i, 0)),
        compiler_params=pltpu.CompilerParams(
            dimension_semantics=("parallel",),
        ),
    )(e1, e2)
    return out[:B, 0]


# ---------------------------------------------------------------------------
# Public forward + pure-JAX reference.
# ---------------------------------------------------------------------------
def ffm_forward(x, field_embeddings, *, batch_tile=2048, use_fused=None):
    """FFM forward pass. Returns (B,) float32 probabilities."""
    n, m, k = field_embeddings.shape
    x = jnp.asarray(x, dtype=jnp.int32) % n
    if x.ndim == 1:
        x = x[None, :]
    B = x.shape[0]

    i1, i2 = np.triu_indices(m, k=1)                           # static pairs
    if i1.shape[0] == 0:                                       # m == 1: no pairs
        return jnp.full((B,), 0.5, dtype=jnp.float32)

    n_pad = _round_up(n, _LANE)
    table_bytes = _NSPLIT * m * k * n_pad * 2
    if use_fused is None:
        # Fused gather requires the (split) table to comfortably fit VMEM.
        use_fused = table_bytes <= 6 * 1024 * 1024 and n_pad <= 4096
    if use_fused:
        return _ffm_forward_fused(x, field_embeddings, i1, i2, batch_tile)
    return _ffm_forward_pairs(x, field_embeddings, i1, i2, batch_tile)


def ffm_reference(x, field_embeddings):
    """Pure-JAX reference mirroring the PyTorch forward exactly."""
    n, m, k = field_embeddings.shape
    x = jnp.asarray(x, dtype=jnp.int32) % n
    if x.ndim == 1:
        x = x[None, :]
    emb = field_embeddings[x]                                  # (B, m, m, k)
    i1, i2 = jnp.triu_indices(m, k=1)
    e1 = emb[:, i1, i2, :]
    e2 = emb[:, i2, i1, :]
    inter = jnp.sum(e1 * e2, axis=(-1, -2))
    return jax.nn.sigmoid(inter)


if __name__ == "__main__":
    # Module hyperparameters (small, deterministic).
    n, m, k = 10, 4, 32

    key = jax.random.PRNGKey(0)
    k_emb, k_x1, k_x2 = jax.random.split(key, 3)

    # torch.randn(n, m, k) equivalent, deterministic.
    field_embeddings = jax.random.normal(k_emb, (n, m, k), dtype=jnp.float32)

    # Small 2-D batch (fused path, single grid step).
    B = 2
    x = jax.random.randint(k_x1, (B, m), 0, 3 * n, dtype=jnp.int32)
    out = jax.block_until_ready(ffm_forward(x, field_embeddings))
    ref = ffm_reference(x, field_embeddings)
    assert out.shape == (B,)
    assert jnp.allclose(out, ref, atol=1e-4, rtol=1e-4), (out, ref)

    # Larger batch (fused path, multiple grid steps + batch padding).
    B2 = 300
    x2 = jax.random.randint(k_x2, (B2, m), 0, 3 * n, dtype=jnp.int32)
    out2 = jax.block_until_ready(ffm_forward(x2, field_embeddings, batch_tile=128))
    ref2 = ffm_reference(x2, field_embeddings)
    assert out2.shape == (B2,)
    assert jnp.allclose(out2, ref2, atol=1e-4, rtol=1e-4)

    # Fallback path (XLA gather feeding the streaming kernel).
    out2b = jax.block_until_ready(
        ffm_forward(x2, field_embeddings, use_fused=False))
    assert out2b.shape == (B2,)
    assert jnp.allclose(out2b, ref2, atol=1e-5, rtol=1e-5)

    # 1-D input promotion (matches the PyTorch unsqueeze_(0) path).
    x1d = jnp.asarray([1, 5, 7, 22], dtype=jnp.int32)
    out1d = jax.block_until_ready(ffm_forward(x1d, field_embeddings))
    ref1d = ffm_reference(x1d, field_embeddings)
    assert out1d.shape == (1,)
    assert jnp.allclose(out1d, ref1d, atol=1e-4, rtol=1e-4)

    print("KERNEL_OK")
</pallas_src>

<mosaic_0001>
module attributes {stable_mosaic.version = 11 : i64} {
  func.func @_ffm_fused_kernel(%arg0: i32, %arg1: memref<12x32x128xbf16, #tpu.memory_space<vmem>>, %arg2: memref<4x128xi32, #tpu.memory_space<vmem>>, %arg3: memref<1x128xf32, #tpu.memory_space<vmem>>) attributes {dimension_semantics = [#tpu.dimension_semantics<parallel>], iteration_bounds = array<i64: 1>, scalar_prefetch = 0 : i64, scratch_operands = 0 : i64, tpu.core_type = #tpu.core_type<tc>, window_params = [{pipeline_mode = #tpu.pipeline_mode<synchronous>, transform_indices = @transform_0, window_bounds = array<i64: 12, 32, 128>}, {transform_indices = @transform_1, window_bounds = array<i64: 4, 128>}, {transform_indices = @transform_2, window_bounds = array<i64: 1, 128>}]} {
    %0 = tpu.iota {dimensions = array<i32: 0>} : vector<128x128xi32>
    %cst = arith.constant 0.000000e+00 : f32
    %1 = vector.broadcast %cst : f32 to vector<32x128xf32>
    %c0 = arith.constant 0 : index
    %c0_0 = arith.constant 0 : index
    %2 = vector.load %arg2[%c0, %c0_0] : memref<4x128xi32, #tpu.memory_space<vmem>>, vector<1x128xi32>
    %3 = vector.broadcast %2 : vector<1x128xi32> to vector<128x128xi32>
    %4 = arith.cmpi eq, %0, %3 : vector<128x128xi32>
    %cst_1 = arith.constant 1.000000e+00 : f32
    %cst_2 = arith.constant 0.000000e+00 : f32
    %5 = vector.broadcast %cst_1 : f32 to vector<128x128xf32>
    %6 = vector.broadcast %cst_2 : f32 to vector<128x128xf32>
    %7 = arith.select %4, %5, %6 : vector<128x128xi1>, vector<128x128xf32>
    %8 = arith.truncf %7 : vector<128x128xf32> to vector<128x128xbf16>
    %cst_3 = arith.constant 0.000000e+00 : f32
    %9 = vector.broadcast %cst_3 : f32 to vector<32x128xf32>
    %c1 = arith.constant 1 : index
    %c0_4 = arith.constant 0 : index
    %c0_5 = arith.constant 0 : index
    %10 = vector.load %arg1[%c1, %c0_4, %c0_5] : memref<12x32x128xbf16, #tpu.memory_space<vmem>>, vector<1x32x128xbf16>
    %11 = vector.shape_cast %10 : vector<1x32x128xbf16> to vector<32x128xbf16>
    %cst_6 = arith.constant dense<0.000000e+00> : vector<32x128xf32>
    %12 = tpu.matmul %11, %8, %cst_6 {dimension_numbers = #tpu.dot_dimension_numbers<[1], [0], [0], [1], [0, 0, 1, 1], [], []>} : vector<32x128xbf16>, vector<128x128xbf16>, vector<32x128xf32> -> vector<32x128xf32>
    %13 = arith.addf %9, %12 : vector<32x128xf32>
    %c5 = arith.constant 5 : index
    %c0_7 = arith.constant 0 : index
    %c0_8 = arith.constant 0 : index
    %14 = vector.load %arg1[%c5, %c0_7, %c0_8] : memref<12x32x128xbf16, #tpu.memory_space<vmem>>, vector<1x32x128xbf16>
    %15 = vector.shape_cast %14 : vector<1x32x128xbf16> to vector<32x128xbf16>
    %cst_9 = arith.constant dense<0.000000e+00> : vector<32x128xf32>
    %16 = tpu.matmul %15, %8, %cst_9 {dimension_numbers = #tpu.dot_dimension_numbers<[1], [0], [0], [1], [0, 0, 1, 1], [], []>} : vector<32x128xbf16>, vector<128x128xbf16>, vector<32x128xf32> -> vector<32x128xf32>
    %17 = arith.addf %13, %16 : vector<32x128xf32>
    %c9 = arith.constant 9 : index
    %c0_10 = arith.constant 0 : index
    %c0_11 = arith.constant 0 : index
    %18 = vector.load %arg1[%c9, %c0_10, %c0_11] : memref<12x32x128xbf16, #tpu.memory_space<vmem>>, vector<1x32x128xbf16>
    %19 = vector.shape_cast %18 : vector<1x32x128xbf16> to vector<32x128xbf16>
    %cst_12 = arith.constant dense<0.000000e+00> : vector<32x128xf32>
    %20 = tpu.matmul %19, %8, %cst_12 {dimension_numbers = #tpu.dot_dimension_numbers<[1], [0], [0], [1], [0, 0, 1, 1], [], []>} : vector<32x128xbf16>, vector<128x128xbf16>, vector<32x128xf32> -> vector<32x128xf32>
    %21 = arith.addf %17, %20 : vector<32x128xf32>
    %c1_13 = arith.constant 1 : index
    %c0_14 = arith.constant 0 : index
    %22 = vector.load %arg2[%c1_13, %c0_14] : memref<4x128xi32, #tpu.memory_space<vmem>>, vector<1x128xi32>
    %23 = vector.broadcast %22 : vector<1x128xi32> to vector<128x128xi32>
    %24 = arith.cmpi eq, %0, %23 : vector<128x128xi32>
    %cst_15 = arith.constant 1.000000e+00 : f32
    %cst_16 = arith.constant 0.000000e+00 : f32
    %25 = vector.broadcast %cst_15 : f32 to vector<128x128xf32>
    %26 = vector.broadcast %cst_16 : f32 to vector<128x128xf32>
    %27 = arith.select %24, %25, %26 : vector<128x128xi1>, vector<128x128xf32>
    %28 = arith.truncf %27 : vector<128x128xf32> to vector<128x128xbf16>
    %cst_17 = arith.constant 0.000000e+00 : f32
    %29 = vector.broadcast %cst_17 : f32 to vector<32x128xf32>
    %c0_18 = arith.constant 0 : index
    %c0_19 = arith.constant 0 : index
    %c0_20 = arith.constant 0 : index
    %30 = vector.load %arg1[%c0_18, %c0_19, %c0_20] : memref<12x32x128xbf16, #tpu.memory_space<vmem>>, vector<1x32x128xbf16>
    %31 = vector.shape_cast %30 : vector<1x32x128xbf16> to vector<32x128xbf16>
    %cst_21 = arith.constant dense<0.000000e+00> : vector<32x128xf32>
    %32 = tpu.matmul %31, %28, %cst_21 {dimension_numbers = #tpu.dot_dimension_numbers<[1], [0], [0], [1], [0, 0, 1, 1], [], []>} : vector<32x128xbf16>, vector<128x128xbf16>, vector<32x128xf32> -> vector<32x128xf32>
    %33 = arith.addf %29, %32 : vector<32x128xf32>
    %c4 = arith.constant 4 : index
    %c0_22 = arith.constant 0 : index
    %c0_23 = arith.constant 0 : index
    %34 = vector.load %arg1[%c4, %c0_22, %c0_23] : memref<12x32x128xbf16, #tpu.memory_space<vmem>>, vector<1x32x128xbf16>
    %35 = vector.shape_cast %34 : vector<1x32x128xbf16> to vector<32x128xbf16>
    %cst_24 = arith.constant dense<0.000000e+00> : vector<32x128xf32>
    %36 = tpu.matmul %35, %28, %cst_24 {dimension_numbers = #tpu.dot_dimension_numbers<[1], [0], [0], [1], [0, 0, 1, 1], [], []>} : vector<32x128xbf16>, vector<128x128xbf16>, vector<32x128xf32> -> vector<32x128xf32>
    %37 = arith.addf %33, %36 : vector<32x128xf32>
    %c8 = arith.constant 8 : index
    %c0_25 = arith.constant 0 : index
    %c0_26 = arith.constant 0 : index
    %38 = vector.load %arg1[%c8, %c0_25, %c0_26] : memref<12x32x128xbf16, #tpu.memory_space<vmem>>, vector<1x32x128xbf16>
    %39 = vector.shape_cast %38 : vector<1x32x128xbf16> to vector<32x128xbf16>
    %cst_27 = arith.constant dense<0.000000e+00> : vector<32x128xf32>
    %40 = tpu.matmul %39, %28, %cst_27 {dimension_numbers = #tpu.dot_dimension_numbers<[1], [0], [0], [1], [0, 0, 1, 1], [], []>} : vector<32x128xbf16>, vector<128x128xbf16>, vector<32x128xf32> -> vector<32x128xf32>
    %41 = arith.addf %37, %40 : vector<32x128xf32>
    %42 = arith.mulf %21, %41 : vector<32x128xf32>
    %43 = arith.addf %1, %42 : vector<32x128xf32>
    %c0_28 = arith.constant 0 : index
    %c0_29 = arith.constant 0 : index
    %44 = vector.load %arg2[%c0_28, %c0_29] : memref<4x128xi32, #tpu.memory_space<vmem>>, vector<1x128xi32>
    %45 = vector.broadcast %44 : vector<1x128xi32> to vector<128x128xi32>
    %46 = arith.cmpi eq, %0, %45 : vector<128x128xi32>
    %cst_30 = arith.constant 1.000000e+00 : f32
    %cst_31 = arith.constant 0.000000e+00 : f32
    %47 = vector.broadcast %cst_30 : f32 to vector<128x128xf32>
    %48 = vector.broadcast %cst_31 : f32 to vector<128x128xf32>
    %49 = arith.select %46, %47, %48 : vector<128x128xi1>, vector<128x128xf32>
    %50 = arith.truncf %49 : vector<128x128xf32> to vector<128x128xbf16>
    %cst_32 = arith.constant 0.000000e+00 : f32
    %51 = vector.broadcast %cst_32 : f32 to vector<32x128xf32>
    %c2 = arith.constant 2 : index
    %c0_33 = arith.constant 0 : index
    %c0_34 = arith.constant 0 : index
    %52 = vector.load %arg1[%c2, %c0_33, %c0_34] : memref<12x32x128xbf16, #tpu.memory_space<vmem>>, vector<1x32x128xbf16>
    %53 = vector.shape_cast %52 : vector<1x32x128xbf16> to vector<32x128xbf16>
    %cst_35 = arith.constant dense<0.000000e+00> : vector<32x128xf32>
    %54 = tpu.matmul %53, %50, %cst_35 {dimension_numbers = #tpu.dot_dimension_numbers<[1], [0], [0], [1], [0, 0, 1, 1], [], []>} : vector<32x128xbf16>, vector<128x128xbf16>, vector<32x128xf32> -> vector<32x128xf32>
    %55 = arith.addf %51, %54 : vector<32x128xf32>
    %c6 = arith.constant 6 : index
    %c0_36 = arith.constant 0 : index
    %c0_37 = arith.constant 0 : index
    %56 = vector.load %arg1[%c6, %c0_36, %c0_37] : memref<12x32x128xbf16, #tpu.memory_space<vmem>>, vector<1x32x128xbf16>
    %57 = vector.shape_cast %56 : vector<1x32x128xbf16> to vector<32x128xbf16>
    %cst_38 = arith.constant dense<0.000000e+00> : vector<32x128xf32>
    %58 = tpu.matmul %57, %50, %cst_38 {dimension_numbers = #tpu.dot_dimension_numbers<[1], [0], [0], [1], [0, 0, 1, 1], [], []>} : vector<32x128xbf16>, vector<128x128xbf16>, vector<32x128xf32> -> vector<32x128xf32>
    %59 = arith.addf %55, %58 : vector<32x128xf32>
    %c10 = arith.constant 10 : index
    %c0_39 = arith.constant 0 : index
    %c0_40 = arith.constant 0 : index
    %60 = vector.load %arg1[%c10, %c0_39, %c0_40] : memref<12x32x128xbf16, #tpu.memory_space<vmem>>, vector<1x32x128xbf16>
    %61 = vector.shape_cast %60 : vector<1x32x128xbf16> to vector<32x128xbf16>
    %cst_41 = arith.constant dense<0.000000e+00> : vector<32x128xf32>
    %62 = tpu.matmul %61, %50, %cst_41 {dimension_numbers = #tpu.dot_dimension_numbers<[1], [0], [0], [1], [0, 0, 1, 1], [], []>} : vector<32x128xbf16>, vector<128x128xbf16>, vector<32x128xf32> -> vector<32x128xf32>
    %63 = arith.addf %59, %62 : vector<32x128xf32>
    %c2_42 = arith.constant 2 : index
    %c0_43 = arith.constant 0 : index
    %64 = vector.load %arg2[%c2_42, %c0_43] : memref<4x128xi32, #tpu.memory_space<vmem>>, vector<1x128xi32>
    %65 = vector.broadcast %64 : vector<1x128xi32> to vector<128x128xi32>
    %66 = arith.cmpi eq, %0, %65 : vector<128x128xi32>
    %cst_44 = arith.constant 1.000000e+00 : f32
    %cst_45 = arith.constant 0.000000e+00 : f32
    %67 = vector.broadcast %cst_44 : f32 to vector<128x128xf32>
    %68 = vector.broadcast %cst_45 : f32 to vector<128x128xf32>
    %69 = arith.select %66, %67, %68 : vector<128x128xi1>, vector<128x128xf32>
    %70 = arith.truncf %69 : vector<128x128xf32> to vector<128x128xbf16>
    %cst_46 = arith.constant 0.000000e+00 : f32
    %71 = vector.broadcast %cst_46 : f32 to vector<32x128xf32>
    %c0_47 = arith.constant 0 : index
    %c0_48 = arith.constant 0 : index
    %c0_49 = arith.constant 0 : index
    %72 = vector.load %arg1[%c0_47, %c0_48, %c0_49] : memref<12x32x128xbf16, #tpu.memory_space<vmem>>, vector<1x32x128xbf16>
    %73 = vector.shape_cast %72 : vector<1x32x128xbf16> to vector<32x128xbf16>
    %cst_50 = arith.constant dense<0.000000e+00> : vector<32x128xf32>
    %74 = tpu.matmul %73, %70, %cst_50 {dimension_numbers = #tpu.dot_dimension_numbers<[1], [0], [0], [1], [0, 0, 1, 1], [], []>} : vector<32x128xbf16>, vector<128x128xbf16>, vector<32x128xf32> -> vector<32x128xf32>
    %75 = arith.addf %71, %74 : vector<32x128xf32>
    %c4_51 = arith.constant 4 : index
    %c0_52 = arith.constant 0 : index
    %c0_53 = arith.constant 0 : index
    %76 = vector.load %arg1[%c4_51, %c0_52, %c0_53] : memref<12x32x128xbf16, #tpu.memory_space<vmem>>, vector<1x32x128xbf16>
    %77 = vector.shape_cast %76 : vector<1x32x128xbf16> to vector<32x128xbf16>
    %cst_54 = arith.constant dense<0.000000e+00> : vector<32x128xf32>
    %78 = tpu.matmul %77, %70, %cst_54 {dimension_numbers = #tpu.dot_dimension_numbers<[1], [0], [0], [1], [0, 0, 1, 1], [], []>} : vector<32x128xbf16>, vector<128x128xbf16>, vector<32x128xf32> -> vector<32x128xf32>
    %79 = arith.addf %75, %78 : vector<32x128xf32>
    %c8_55 = arith.constant 8 : index
    %c0_56 = arith.constant 0 : index
    %c0_57 = arith.constant 0 : index
    %80 = vector.load %arg1[%c8_55, %c0_56, %c0_57] : memref<12x32x128xbf16, #tpu.memory_space<vmem>>, vector<1x32x128xbf16>
    %81 = vector.shape_cast %80 : vector<1x32x128xbf16> to vector<32x128xbf16>
    %cst_58 = arith.constant dense<0.000000e+00> : vector<32x128xf32>
    %82 = tpu.matmul %81, %70, %cst_58 {dimension_numbers = #tpu.dot_dimension_numbers<[1], [0], [0], [1], [0, 0, 1, 1], [], []>} : vector<32x128xbf16>, vector<128x128xbf16>, vector<32x128xf32> -> vector<32x128xf32>
    %83 = arith.addf %79, %82 : vector<32x128xf32>
    %84 = arith.mulf %63, %83 : vector<32x128xf32>
    %85 = arith.addf %43, %84 : vector<32x128xf32>
    %c0_59 = arith.constant 0 : index
    %c0_60 = arith.constant 0 : index
    %86 = vector.load %arg2[%c0_59, %c0_60] : memref<4x128xi32, #tpu.memory_space<vmem>>, vector<1x128xi32>
    %87 = vector.broadcast %86 : vector<1x128xi32> to vector<128x128xi32>
    %88 = arith.cmpi eq, %0, %87 : vector<128x128xi32>
    %cst_61 = arith.constant 1.000000e+00 : f32
    %cst_62 = arith.constant 0.000000e+00 : f32
    %89 = vector.broadcast %cst_61 : f32 to vector<128x128xf32>
    %90 = vector.broadcast %cst_62 : f32 to vector<128x128xf32>
    %91 = arith.select %88, %89, %90 : vector<128x128xi1>, vector<128x128xf32>
    %92 = arith.truncf %91 : vector<128x128xf32> to vector<128x128xbf16>
    %cst_63 = arith.constant 0.000000e+00 : f32
    %93 = vector.broadcast %cst_63 : f32 to vector<32x128xf32>
    %c3 = arith.constant 3 : index
    %c0_64 = arith.constant 0 : index
    %c0_65 = arith.constant 0 : index
    %94 = vector.load %arg1[%c3, %c0_64, %c0_65] : memref<12x32x128xbf16, #tpu.memory_space<vmem>>, vector<1x32x128xbf16>
    %95 = vector.shape_cast %94 : vector<1x32x128xbf16> to vector<32x128xbf16>
    %cst_66 = arith.constant dense<0.000000e+00> : vector<32x128xf32>
    %96 = tpu.matmul %95, %92, %cst_66 {dimension_numbers = #tpu.dot_dimension_numbers<[1], [0], [0], [1], [0, 0, 1, 1], [], []>} : vector<32x128xbf16>, vector<128x128xbf16>, vector<32x128xf32> -> vector<32x128xf32>
    %97 = arith.addf %93, %96 : vector<32x128xf32>
    %c7 = arith.constant 7 : index
    %c0_67 = arith.constant 0 : index
    %c0_68 = arith.constant 0 : index
    %98 = vector.load %arg1[%c7, %c0_67, %c0_68] : memref<12x32x128xbf16, #tpu.memory_space<vmem>>, vector<1x32x128xbf16>
    %99 = vector.shape_cast %98 : vector<1x32x128xbf16> to vector<32x128xbf16>
    %cst_69 = arith.constant dense<0.000000e+00> : vector<32x128xf32>
    %100 = tpu.matmul %99, %92, %cst_69 {dimension_numbers = #tpu.dot_dimension_numbers<[1], [0], [0], [1], [0, 0, 1, 1], [], []>} : vector<32x128xbf16>, vector<128x128xbf16>, vector<32x128xf32> -> vector<32x128xf32>
    %101 = arith.addf %97, %100 : vector<32x128xf32>
    %c11 = arith.constant 11 : index
    %c0_70 = arith.constant 0 : index
    %c0_71 = arith.constant 0 : index
    %102 = vector.load %arg1[%c11, %c0_70, %c0_71] : memref<12x32x128xbf16, #tpu.memory_space<vmem>>, vector<1x32x128xbf16>
    %103 = vector.shape_cast %102 : vector<1x32x128xbf16> to vector<32x128xbf16>
    %cst_72 = arith.constant dense<0.000000e+00> : vector<32x128xf32>
    %104 = tpu.matmul %103, %92, %cst_72 {dimension_numbers = #tpu.dot_dimension_numbers<[1], [0], [0], [1], [0, 0, 1, 1], [], []>} : vector<32x128xbf16>, vector<128x128xbf16>, vector<32x128xf32> -> vector<32x128xf32>
    %105 = arith.addf %101, %104 : vector<32x128xf32>
    %c3_73 = arith.constant 3 : index
    %c0_74 = arith.constant 0 : index
    %106 = vector.load %arg2[%c3_73, %c0_74] : memref<4x128xi32, #tpu.memory_space<vmem>>, vector<1x128xi32>
    %107 = vector.broadcast %106 : vector<1x128xi32> to vector<128x128xi32>
    %108 = arith.cmpi eq, %0, %107 : vector<128x128xi32>
    %cst_75 = arith.constant 1.000000e+00 : f32
    %cst_76 = arith.constant 0.000000e+00 : f32
    %109 = vector.broadcast %cst_75 : f32 to vector<128x128xf32>
    %110 = vector.broadcast %cst_76 : f32 to vector<128x128xf32>
    %111 = arith.select %108, %109, %110 : vector<128x128xi1>, vector<128x128xf32>
    %112 = arith.truncf %111 : vector<128x128xf32> to vector<128x128xbf16>
    %cst_77 = arith.constant 0.000000e+00 : f32
    %113 = vector.broadcast %cst_77 : f32 to vector<32x128xf32>
    %c0_78 = arith.constant 0 : index
    %c0_79 = arith.constant 0 : index
    %c0_80 = arith.constant 0 : index
    %114 = vector.load %arg1[%c0_78, %c0_79, %c0_80] : memref<12x32x128xbf16, #tpu.memory_space<vmem>>, vector<1x32x128xbf16>
    %115 = vector.shape_cast %114 : vector<1x32x128xbf16> to vector<32x128xbf16>
    %cst_81 = arith.constant dense<0.000000e+00> : vector<32x128xf32>
    %116 = tpu.matmul %115, %112, %cst_81 {dimension_numbers = #tpu.dot_dimension_numbers<[1], [0], [0], [1], [0, 0, 1, 1], [], []>} : vector<32x128xbf16>, vector<128x128xbf16>, vector<32x128xf32> -> vector<32x128xf32>
    %117 = arith.addf %113, %116 : vector<32x128xf32>
    %c4_82 = arith.constant 4 : index
    %c0_83 = arith.constant 0 : index
    %c0_84 = arith.constant 0 : index
    %118 = vector.load %arg1[%c4_82, %c0_83, %c0_84] : memref<12x32x128xbf16, #tpu.memory_space<vmem>>, vector<1x32x128xbf16>
    %119 = vector.shape_cast %118 : vector<1x32x128xbf16> to vector<32x128xbf16>
    %cst_85 = arith.constant dense<0.000000e+00> : vector<32x128xf32>
    %120 = tpu.matmul %119, %112, %cst_85 {dimension_numbers = #tpu.dot_dimension_numbers<[1], [0], [0], [1], [0, 0, 1, 1], [], []>} : vector<32x128xbf16>, vector<128x128xbf16>, vector<32x128xf32> -> vector<32x128xf32>
    %121 = arith.addf %117, %120 : vector<32x128xf32>
    %c8_86 = arith.constant 8 : index
    %c0_87 = arith.constant 0 : index
    %c0_88 = arith.constant 0 : index
    %122 = vector.load %arg1[%c8_86, %c0_87, %c0_88] : memref<12x32x128xbf16, #tpu.memory_space<vmem>>, vector<1x32x128xbf16>
    %123 = vector.shape_cast %122 : vector<1x32x128xbf16> to vector<32x128xbf16>
    %cst_89 = arith.constant dense<0.000000e+00> : vector<32x128xf32>
    %124 = tpu.matmul %123, %112, %cst_89 {dimension_numbers = #tpu.dot_dimension_numbers<[1], [0], [0], [1], [0, 0, 1, 1], [], []>} : vector<32x128xbf16>, vector<128x128xbf16>, vector<32x128xf32> -> vector<32x128xf32>
    %125 = arith.addf %121, %124 : vector<32x128xf32>
    %126 = arith.mulf %105, %125 : vector<32x128xf32>
    %127 = arith.addf %85, %126 : vector<32x128xf32>
    %c1_90 = arith.constant 1 : index
    %c0_91 = arith.constant 0 : index
    %128 = vector.load %arg2[%c1_90, %c0_91] : memref<4x128xi32, #tpu.memory_space<vmem>>, vector<1x128xi32>
    %129 = vector.broadcast %128 : vector<1x128xi32> to vector<128x128xi32>
    %130 = arith.cmpi eq, %0, %129 : vector<128x128xi32>
    %cst_92 = arith.constant 1.000000e+00 : f32
    %cst_93 = arith.constant 0.000000e+00 : f32
    %131 = vector.broadcast %cst_92 : f32 to vector<128x128xf32>
    %132 = vector.broadcast %cst_93 : f32 to vector<128x128xf32>
    %133 = arith.select %130, %131, %132 : vector<128x128xi1>, vector<128x128xf32>
    %134 = arith.truncf %133 : vector<128x128xf32> to vector<128x128xbf16>
    %cst_94 = arith.constant 0.000000e+00 : f32
    %135 = vector.broadcast %cst_94 : f32 to vector<32x128xf32>
    %c2_95 = arith.constant 2 : index
    %c0_96 = arith.constant 0 : index
    %c0_97 = arith.constant 0 : index
    %136 = vector.load %arg1[%c2_95, %c0_96, %c0_97] : memref<12x32x128xbf16, #tpu.memory_space<vmem>>, vector<1x32x128xbf16>
    %137 = vector.shape_cast %136 : vector<1x32x128xbf16> to vector<32x128xbf16>
    %cst_98 = arith.constant dense<0.000000e+00> : vector<32x128xf32>
    %138 = tpu.matmul %137, %134, %cst_98 {dimension_numbers = #tpu.dot_dimension_numbers<[1], [0], [0], [1], [0, 0, 1, 1], [], []>} : vector<32x128xbf16>, vector<128x128xbf16>, vector<32x128xf32> -> vector<32x128xf32>
    %139 = arith.addf %135, %138 : vector<32x128xf32>
    %c6_99 = arith.constant 6 : index
    %c0_100 = arith.constant 0 : index
    %c0_101 = arith.constant 0 : index
    %140 = vector.load %arg1[%c6_99, %c0_100, %c0_101] : memref<12x32x128xbf16, #tpu.memory_space<vmem>>, vector<1x32x128xbf16>
    %141 = vector.shape_cast %140 : vector<1x32x128xbf16> to vector<32x128xbf16>
    %cst_102 = arith.constant dense<0.000000e+00> : vector<32x128xf32>
    %142 = tpu.matmul %141, %134, %cst_102 {dimension_numbers = #tpu.dot_dimension_numbers<[1], [0], [0], [1], [0, 0, 1, 1], [], []>} : vector<32x128xbf16>, vector<128x128xbf16>, vector<32x128xf32> -> vector<32x128xf32>
    %143 = arith.addf %139, %142 : vector<32x128xf32>
    %c10_103 = arith.constant 10 : index
    %c0_104 = arith.constant 0 : index
    %c0_105 = arith.constant 0 : index
    %144 = vector.load %arg1[%c10_103, %c0_104, %c0_105] : memref<12x32x128xbf16, #tpu.memory_space<vmem>>, vector<1x32x128xbf16>
    %145 = vector.shape_cast %144 : vector<1x32x128xbf16> to vector<32x128xbf16>
    %cst_106 = arith.constant dense<0.000000e+00> : vector<32x128xf32>
    %146 = tpu.matmul %145, %134, %cst_106 {dimension_numbers = #tpu.dot_dimension_numbers<[1], [0], [0], [1], [0, 0, 1, 1], [], []>} : vector<32x128xbf16>, vector<128x128xbf16>, vector<32x128xf32> -> vector<32x128xf32>
    %147 = arith.addf %143, %146 : vector<32x128xf32>
    %c2_107 = arith.constant 2 : index
    %c0_108 = arith.constant 0 : index
    %148 = vector.load %arg2[%c2_107, %c0_108] : memref<4x128xi32, #tpu.memory_space<vmem>>, vector<1x128xi32>
    %149 = vector.broadcast %148 : vector<1x128xi32> to vector<128x128xi32>
    %150 = arith.cmpi eq, %0, %149 : vector<128x128xi32>
    %cst_109 = arith.constant 1.000000e+00 : f32
    %cst_110 = arith.constant 0.000000e+00 : f32
    %151 = vector.broadcast %cst_109 : f32 to vector<128x128xf32>
    %152 = vector.broadcast %cst_110 : f32 to vector<128x128xf32>
    %153 = arith.select %150, %151, %152 : vector<128x128xi1>, vector<128x128xf32>
    %154 = arith.truncf %153 : vector<128x128xf32> to vector<128x128xbf16>
    %cst_111 = arith.constant 0.000000e+00 : f32
    %155 = vector.broadcast %cst_111 : f32 to vector<32x128xf32>
    %c1_112 = arith.constant 1 : index
    %c0_113 = arith.constant 0 : index
    %c0_114 = arith.constant 0 : index
    %156 = vector.load %arg1[%c1_112, %c0_113, %c0_114] : memref<12x32x128xbf16, #tpu.memory_space<vmem>>, vector<1x32x128xbf16>
    %157 = vector.shape_cast %156 : vector<1x32x128xbf16> to vector<32x128xbf16>
    %cst_115 = arith.constant dense<0.000000e+00> : vector<32x128xf32>
    %158 = tpu.matmul %157, %154, %cst_115 {dimension_numbers = #tpu.dot_dimension_numbers<[1], [0], [0], [1], [0, 0, 1, 1], [], []>} : vector<32x128xbf16>, vector<128x128xbf16>, vector<32x128xf32> -> vector<32x128xf32>
    %159 = arith.addf %155, %158 : vector<32x128xf32>
    %c5_116 = arith.constant 5 : index
    %c0_117 = arith.constant 0 : index
    %c0_118 = arith.constant 0 : index
    %160 = vector.load %arg1[%c5_116, %c0_117, %c0_118] : memref<12x32x128xbf16, #tpu.memory_space<vmem>>, vector<1x32x128xbf16>
    %161 = vector.shape_cast %160 : vector<1x32x128xbf16> to vector<32x128xbf16>
    %cst_119 = arith.constant dense<0.000000e+00> : vector<32x128xf32>
    %162 = tpu.matmul %161, %154, %cst_119 {dimension_numbers = #tpu.dot_dimension_numbers<[1], [0], [0], [1], [0, 0, 1, 1], [], []>} : vector<32x128xbf16>, vector<128x128xbf16>, vector<32x128xf32> -> vector<32x128xf32>
    %163 = arith.addf %159, %162 : vector<32x128xf32>
    %c9_120 = arith.constant 9 : index
    %c0_121 = arith.constant 0 : index
    %c0_122 = arith.constant 0 : index
    %164 = vector.load %arg1[%c9_120, %c0_121, %c0_122] : memref<12x32x128xbf16, #tpu.memory_space<vmem>>, vector<1x32x128xbf16>
    %165 = vector.shape_cast %164 : vector<1x32x128xbf16> to vector<32x128xbf16>
    %cst_123 = arith.constant dense<0.000000e+00> : vector<32x128xf32>
    %166 = tpu.matmul %165, %154, %cst_123 {dimension_numbers = #tpu.dot_dimension_numbers<[1], [0], [0], [1], [0, 0, 1, 1], [], []>} : vector<32x128xbf16>, vector<128x128xbf16>, vector<32x128xf32> -> vector<32x128xf32>
    %167 = arith.addf %163, %166 : vector<32x128xf32>
    %168 = arith.mulf %147, %167 : vector<32x128xf32>
    %169 = arith.addf %127, %168 : vector<32x128xf32>
    %c1_124 = arith.constant 1 : index
    %c0_125 = arith.constant 0 : index
    %170 = vector.load %arg2[%c1_124, %c0_125] : memref<4x128xi32, #tpu.memory_space<vmem>>, vector<1x128xi32>
    %171 = vector.broadcast %170 : vector<1x128xi32> to vector<128x128xi32>
    %172 = arith.cmpi eq, %0, %171 : vector<128x128xi32>
    %cst_126 = arith.constant 1.000000e+00 : f32
    %cst_127 = arith.constant 0.000000e+00 : f32
    %173 = vector.broadcast %cst_126 : f32 to vector<128x128xf32>
    %174 = vector.broadcast %cst_127 : f32 to vector<128x128xf32>
    %175 = arith.select %172, %173, %174 : vector<128x128xi1>, vector<128x128xf32>
    %176 = arith.truncf %175 : vector<128x128xf32> to vector<128x128xbf16>
    %cst_128 = arith.constant 0.000000e+00 : f32
    %177 = vector.broadcast %cst_128 : f32 to vector<32x128xf32>
    %c3_129 = arith.constant 3 : index
    %c0_130 = arith.constant 0 : index
    %c0_131 = arith.constant 0 : index
    %178 = vector.load %arg1[%c3_129, %c0_130, %c0_131] : memref<12x32x128xbf16, #tpu.memory_space<vmem>>, vector<1x32x128xbf16>
    %179 = vector.shape_cast %178 : vector<1x32x128xbf16> to vector<32x128xbf16>
    %cst_132 = arith.constant dense<0.000000e+00> : vector<32x128xf32>
    %180 = tpu.matmul %179, %176, %cst_132 {dimension_numbers = #tpu.dot_dimension_numbers<[1], [0], [0], [1], [0, 0, 1, 1], [], []>} : vector<32x128xbf16>, vector<128x128xbf16>, vector<32x128xf32> -> vector<32x128xf32>
    %181 = arith.addf %177, %180 : vector<32x128xf32>
    %c7_133 = arith.constant 7 : index
    %c0_134 = arith.constant 0 : index
    %c0_135 = arith.constant 0 : index
    %182 = vector.load %arg1[%c7_133, %c0_134, %c0_135] : memref<12x32x128xbf16, #tpu.memory_space<vmem>>, vector<1x32x128xbf16>
    %183 = vector.shape_cast %182 : vector<1x32x128xbf16> to vector<32x128xbf16>
    %cst_136 = arith.constant dense<0.000000e+00> : vector<32x128xf32>
    %184 = tpu.matmul %183, %176, %cst_136 {dimension_numbers = #tpu.dot_dimension_numbers<[1], [0], [0], [1], [0, 0, 1, 1], [], []>} : vector<32x128xbf16>, vector<128x128xbf16>, vector<32x128xf32> -> vector<32x128xf32>
    %185 = arith.addf %181, %184 : vector<32x128xf32>
    %c11_137 = arith.constant 11 : index
    %c0_138 = arith.constant 0 : index
    %c0_139 = arith.constant 0 : index
    %186 = vector.load %arg1[%c11_137, %c0_138, %c0_139] : memref<12x32x128xbf16, #tpu.memory_space<vmem>>, vector<1x32x128xbf16>
    %187 = vector.shape_cast %186 : vector<1x32x128xbf16> to vector<32x128xbf16>
    %cst_140 = arith.constant dense<0.000000e+00> : vector<32x128xf32>
    %188 = tpu.matmul %187, %176, %cst_140 {dimension_numbers = #tpu.dot_dimension_numbers<[1], [0], [0], [1], [0, 0, 1, 1], [], []>} : vector<32x128xbf16>, vector<128x128xbf16>, vector<32x128xf32> -> vector<32x128xf32>
    %189 = arith.addf %185, %188 : vector<32x128xf32>
    %c3_141 = arith.constant 3 : index
    %c0_142 = arith.constant 0 : index
    %190 = vector.load %arg2[%c3_141, %c0_142] : memref<4x128xi32, #tpu.memory_space<vmem>>, vector<1x128xi32>
    %191 = vector.broadcast %190 : vector<1x128xi32> to vector<128x128xi32>
    %192 = arith.cmpi eq, %0, %191 : vector<128x128xi32>
    %cst_143 = arith.constant 1.000000e+00 : f32
    %cst_144 = arith.constant 0.000000e+00 : f32
    %193 = vector.broadcast %cst_143 : f32 to vector<128x128xf32>
    %194 = vector.broadcast %cst_144 : f32 to vector<128x128xf32>
    %195 = arith.select %192, %193, %194 : vector<128x128xi1>, vector<128x128xf32>
    %196 = arith.truncf %195 : vector<128x128xf32> to vector<128x128xbf16>
    %cst_145 = arith.constant 0.000000e+00 : f32
    %197 = vector.broadcast %cst_145 : f32 to vector<32x128xf32>
    %c1_146 = arith.constant 1 : index
    %c0_147 = arith.constant 0 : index
    %c0_148 = arith.constant 0 : index
    %198 = vector.load %arg1[%c1_146, %c0_147, %c0_148] : memref<12x32x128xbf16, #tpu.memory_space<vmem>>, vector<1x32x128xbf16>
    %199 = vector.shape_cast %198 : vector<1x32x128xbf16> to vector<32x128xbf16>
    %cst_149 = arith.constant dense<0.000000e+00> : vector<32x128xf32>
    %200 = tpu.matmul %199, %196, %cst_149 {dimension_numbers = #tpu.dot_dimension_numbers<[1], [0], [0], [1], [0, 0, 1, 1], [], []>} : vector<32x128xbf16>, vector<128x128xbf16>, vector<32x128xf32> -> vector<32x128xf32>
    %201 = arith.addf %197, %200 : vector<32x128xf32>
    %c5_150 = arith.constant 5 : index
    %c0_151 = arith.constant 0 : index
    %c0_152 = arith.constant 0 : index
    %202 = vector.load %arg1[%c5_150, %c0_151, %c0_152] : memref<12x32x128xbf16, #tpu.memory_space<vmem>>, vector<1x32x128xbf16>
    %203 = vector.shape_cast %202 : vector<1x32x128xbf16> to vector<32x128xbf16>
    %cst_153 = arith.constant dense<0.000000e+00> : vector<32x128xf32>
    %204 = tpu.matmul %203, %196, %cst_153 {dimension_numbers = #tpu.dot_dimension_numbers<[1], [0], [0], [1], [0, 0, 1, 1], [], []>} : vector<32x128xbf16>, vector<128x128xbf16>, vector<32x128xf32> -> vector<32x128xf32>
    %205 = arith.addf %201, %204 : vector<32x128xf32>
    %c9_154 = arith.constant 9 : index
    %c0_155 = arith.constant 0 : index
    %c0_156 = arith.constant 0 : index
    %206 = vector.load %arg1[%c9_154, %c0_155, %c0_156] : memref<12x32x128xbf16, #tpu.memory_space<vmem>>, vector<1x32x128xbf16>
    %207 = vector.shape_cast %206 : vector<1x32x128xbf16> to vector<32x128xbf16>
    %cst_157 = arith.constant dense<0.000000e+00> : vector<32x128xf32>
    %208 = tpu.matmul %207, %196, %cst_157 {dimension_numbers = #tpu.dot_dimension_numbers<[1], [0], [0], [1], [0, 0, 1, 1], [], []>} : vector<32x128xbf16>, vector<128x128xbf16>, vector<32x128xf32> -> vector<32x128xf32>
    %209 = arith.addf %205, %208 : vector<32x128xf32>
    %210 = arith.mulf %189, %209 : vector<32x128xf32>
    %211 = arith.addf %169, %210 : vector<32x128xf32>
    %c2_158 = arith.constant 2 : index
    %c0_159 = arith.constant 0 : index
    %212 = vector.load %arg2[%c2_158, %c0_159] : memref<4x128xi32, #tpu.memory_space<vmem>>, vector<1x128xi32>
    %213 = vector.broadcast %212 : vector<1x128xi32> to vector<128x128xi32>
    %214 = arith.cmpi eq, %0, %213 : vector<128x128xi32>
    %cst_160 = arith.constant 1.000000e+00 : f32
    %cst_161 = arith.constant 0.000000e+00 : f32
    %215 = vector.broadcast %cst_160 : f32 to vector<128x128xf32>
    %216 = vector.broadcast %cst_161 : f32 to vector<128x128xf32>
    %217 = arith.select %214, %215, %216 : vector<128x128xi1>, vector<128x128xf32>
    %218 = arith.truncf %217 : vector<128x128xf32> to vector<128x128xbf16>
    %cst_162 = arith.constant 0.000000e+00 : f32
    %219 = vector.broadcast %cst_162 : f32 to vector<32x128xf32>
    %c3_163 = arith.constant 3 : index
    %c0_164 = arith.constant 0 : index
    %c0_165 = arith.constant 0 : index
    %220 = vector.load %arg1[%c3_163, %c0_164, %c0_165] : memref<12x32x128xbf16, #tpu.memory_space<vmem>>, vector<1x32x128xbf16>
    %221 = vector.shape_cast %220 : vector<1x32x128xbf16> to vector<32x128xbf16>
    %cst_166 = arith.constant dense<0.000000e+00> : vector<32x128xf32>
    %222 = tpu.matmul %221, %218, %cst_166 {dimension_numbers = #tpu.dot_dimension_numbers<[1], [0], [0], [1], [0, 0, 1, 1], [], []>} : vector<32x128xbf16>, vector<128x128xbf16>, vector<32x128xf32> -> vector<32x128xf32>
    %223 = arith.addf %219, %222 : vector<32x128xf32>
    %c7_167 = arith.constant 7 : index
    %c0_168 = arith.constant 0 : index
    %c0_169 = arith.constant 0 : index
    %224 = vector.load %arg1[%c7_167, %c0_168, %c0_169] : memref<12x32x128xbf16, #tpu.memory_space<vmem>>, vector<1x32x128xbf16>
    %225 = vector.shape_cast %224 : vector<1x32x128xbf16> to vector<32x128xbf16>
    %cst_170 = arith.constant dense<0.000000e+00> : vector<32x128xf32>
    %226 = tpu.matmul %225, %218, %cst_170 {dimension_numbers = #tpu.dot_dimension_numbers<[1], [0], [0], [1], [0, 0, 1, 1], [], []>} : vector<32x128xbf16>, vector<128x128xbf16>, vector<32x128xf32> -> vector<32x128xf32>
    %227 = arith.addf %223, %226 : vector<32x128xf32>
    %c11_171 = arith.constant 11 : index
    %c0_172 = arith.constant 0 : index
    %c0_173 = arith.constant 0 : index
    %228 = vector.load %arg1[%c11_171, %c0_172, %c0_173] : memref<12x32x128xbf16, #tpu.memory_space<vmem>>, vector<1x32x128xbf16>
    %229 = vector.shape_cast %228 : vector<1x32x128xbf16> to vector<32x128xbf16>
    %cst_174 = arith.constant dense<0.000000e+00> : vector<32x128xf32>
    %230 = tpu.matmul %229, %218, %cst_174 {dimension_numbers = #tpu.dot_dimension_numbers<[1], [0], [0], [1], [0, 0, 1, 1], [], []>} : vector<32x128xbf16>, vector<128x128xbf16>, vector<32x128xf32> -> vector<32x128xf32>
    %231 = arith.addf %227, %230 : vector<32x128xf32>
    %c3_175 = arith.constant 3 : index
    %c0_176 = arith.constant 0 : index
    %232 = vector.load %arg2[%c3_175, %c0_176] : memref<4x128xi32, #tpu.memory_space<vmem>>, vector<1x128xi32>
    %233 = vector.broadcast %232 : vector<1x128xi32> to vector<128x128xi32>
    %234 = arith.cmpi eq, %0, %233 : vector<128x128xi32>
    %cst_177 = arith.constant 1.000000e+00 : f32
    %cst_178 = arith.constant 0.000000e+00 : f32
    %235 = vector.broadcast %cst_177 : f32 to vector<128x128xf32>
    %236 = vector.broadcast %cst_178 : f32 to vector<128x128xf32>
    %237 = arith.select %234, %235, %236 : vector<128x128xi1>, vector<128x128xf32>
    %238 = arith.truncf %237 : vector<128x128xf32> to vector<128x128xbf16>
    %cst_179 = arith.constant 0.000000e+00 : f32
    %239 = vector.broadcast %cst_179 : f32 to vector<32x128xf32>
    %c2_180 = arith.constant 2 : index
    %c0_181 = arith.constant 0 : index
    %c0_182 = arith.constant 0 : index
    %240 = vector.load %arg1[%c2_180, %c0_181, %c0_182] : memref<12x32x128xbf16, #tpu.memory_space<vmem>>, vector<1x32x128xbf16>
    %241 = vector.shape_cast %240 : vector<1x32x128xbf16> to vector<32x128xbf16>
    %cst_183 = arith.constant dense<0.000000e+00> : vector<32x128xf32>
    %242 = tpu.matmul %241, %238, %cst_183 {dimension_numbers = #tpu.dot_dimension_numbers<[1], [0], [0], [1], [0, 0, 1, 1], [], []>} : vector<32x128xbf16>, vector<128x128xbf16>, vector<32x128xf32> -> vector<32x128xf32>
    %243 = arith.addf %239, %242 : vector<32x128xf32>
    %c6_184 = arith.constant 6 : index
    %c0_185 = arith.constant 0 : index
    %c0_186 = arith.constant 0 : index
    %244 = vector.load %arg1[%c6_184, %c0_185, %c0_186] : memref<12x32x128xbf16, #tpu.memory_space<vmem>>, vector<1x32x128xbf16>
    %245 = vector.shape_cast %244 : vector<1x32x128xbf16> to vector<32x128xbf16>
    %cst_187 = arith.constant dense<0.000000e+00> : vector<32x128xf32>
    %246 = tpu.matmul %245, %238, %cst_187 {dimension_numbers = #tpu.dot_dimension_numbers<[1], [0], [0], [1], [0, 0, 1, 1], [], []>} : vector<32x128xbf16>, vector<128x128xbf16>, vector<32x128xf32> -> vector<32x128xf32>
    %247 = arith.addf %243, %246 : vector<32x128xf32>
    %c10_188 = arith.constant 10 : index
    %c0_189 = arith.constant 0 : index
    %c0_190 = arith.constant 0 : index
    %248 = vector.load %arg1[%c10_188, %c0_189, %c0_190] : memref<12x32x128xbf16, #tpu.memory_space<vmem>>, vector<1x32x128xbf16>
    %249 = vector.shape_cast %248 : vector<1x32x128xbf16> to vector<32x128xbf16>
    %cst_191 = arith.constant dense<0.000000e+00> : vector<32x128xf32>
    %250 = tpu.matmul %249, %238, %cst_191 {dimension_numbers = #tpu.dot_dimension_numbers<[1], [0], [0], [1], [0, 0, 1, 1], [], []>} : vector<32x128xbf16>, vector<128x128xbf16>, vector<32x128xf32> -> vector<32x128xf32>
    %251 = arith.addf %247, %250 : vector<32x128xf32>
    %252 = arith.mulf %231, %251 : vector<32x128xf32>
    %253 = arith.addf %211, %252 : vector<32x128xf32>
    %cst_192 = arith.constant dense<0.000000e+00> : vector<128xf32>
    %254 = vector.multi_reduction <add>, %253, %cst_192 [0] : vector<32x128xf32> to vector<128xf32>
    %255 = vector.shape_cast %254 : vector<128xf32> to vector<1x128xf32>
    %cst_193 = arith.constant 0.000000e+00 : f32
    %256 = vector.broadcast %cst_193 : f32 to vector<1x128xf32>
    %257 = arith.subf %256, %255 : vector<1x128xf32>
    %258 = math.exp %257 : vector<1x128xf32>
    %cst_194 = arith.constant 1.000000e+00 : f32
    %259 = vector.broadcast %cst_194 : f32 to vector<1x128xf32>
    %260 = arith.addf %259, %258 : vector<1x128xf32>
    %cst_195 = arith.constant 1.000000e+00 : f32
    %261 = vector.broadcast %cst_195 : f32 to vector<1x128xf32>
    %262 = arith.divf %261, %260 : vector<1x128xf32>
    %c0_196 = arith.constant 0 : index
    %c0_197 = arith.constant 0 : index
    %263 = vector.load %arg3[%c0_196, %c0_197] : memref<1x128xf32, #tpu.memory_space<vmem>>, vector<1x128xf32>
    tpu.vector_store %arg3[%c0_196, %c0_197], %262 {strides = array<i32>} : memref<1x128xf32, #tpu.memory_space<vmem>>, vector<1x128xf32>,
    return
  }
  func.func @transform_0(%arg0: i32) -> (i32, i32, i32) {
    %c0_i32 = arith.constant 0 : i32
    %c0_i32_0 = arith.constant 0 : i32
    %c0_i32_1 = arith.constant 0 : i32
    %c0_i32_2 = arith.constant 0 : i32
    return %c0_i32, %c0_i32_0, %c0_i32_1 : i32, i32, i32
  }
  func.func @transform_1(%arg0: i32) -> (i32, i32) {
    %c0_i32 = arith.constant 0 : i32
    %c0_i32_0 = arith.constant 0 : i32
    return %c0_i32, %arg0 : i32, i32
  }
  func.func @transform_2(%arg0: i32) -> (i32, i32) {
    %c0_i32 = arith.constant 0 : i32
    %c0_i32_0 = arith.constant 0 : i32
    return %c0_i32, %arg0 : i32, i32
  }
}

</mosaic_0001>

<llo_original>
// kernel: tpu_custom_call.1
$region0: #{tpu_custom_call.1}
  #allocation0 [shape = 'u32[]', space=smem, size = 0x4, offset = 0x4, fixed_abs, tag = 'smem constant byte address 0x4 - core index']
  #allocation1 [shape = 'u32[144,128]{1,0:T(1,128)}', space=vmem, size = 0x12000, scoped, tag = 'internal scratch']
  %s0 = inlined_call_operand.hbm [shape: bf16[12,32,128], index: 0, kind: input, shape index: {}]
  %s1 = inlined_call_operand.hbm [shape: s32[4,128], index: 1, kind: input, shape index: {}]
  %s2 = inlined_call_operand.hbm [shape: f32[1,128], index: 2, kind: output, shape index: {}]
  %s3 = sld [smem:[#allocation0]]
  $region26: #{tpu_custom_call.1} parent=0
    _
  %s5 = ssub.s32 1, %s3
  %s6 = scalar_select 0, %s5, %s3
  $region1: #{tpu_custom_call.1} parent=0
    #allocation2 [shape = 'u8[98304]{0}', space=vmem, size = 0x18000, scoped, tag = 'input window, operand 0, single buffered']
    #allocation3 [shape = 's32[1]{0}', space=sflag, size = 0x4, scoped, tag = 'scoped memory for tpu_custom_call.1']
    #allocation4 [shape = 's32[1]{0}', space=sflag, size = 0x4, scoped, tag = 'scoped memory for tpu_custom_call.1']
    #allocation5 [shape = 'u8[2048]{0}', space=vmem, size = 0x800, scoped, tag = 'input window, operand 1, single buffered']
    #allocation6 [shape = 's32[1]{0}', space=sflag, size = 0x4, scoped, tag = 'scoped memory for tpu_custom_call.1']
    #allocation7 [shape = 'u8[512]{0}', space=vmem, size = 0x400, scoped, tag = 'output window, operand 0, single buffered']
    %7 = vsyncpa [#allocation3], 0
    %8 = vsyncpa [#allocation6], 0
    %9 = vsyncpa [#allocation4], 0
    // Predicated region
    $region2: #{tpu_custom_call.1} parent=1 // pred_check
      _
    $region3: #{tpu_custom_call.1} parent=1 // pred_check_branch
      %11 = sbr.rel (0) target = $region5
    $region4: #{tpu_custom_call.1} parent=1 // pred_region
      %s13 = ssub.s32 3072, 3072
      %14 = vsyncadd [#allocation3], %s13
      %s15 = sshll.u32 [#allocation2], 4
      %s16 = int_to_ptr.vmem [resolvable:$true] %s15
      %21 = dma.hbm_to_vmem [thread:$0]  %s0, 3072, %s16, [#allocation3], 64, 64, 4
    $region5: #{tpu_custom_call.1} parent=1 // pred_fallthru
      _
    // Predicated region
    $region6: #{tpu_custom_call.1} parent=1 // pred_check
      _
    $region7: #{tpu_custom_call.1} parent=1 // pred_check_branch
      %23 = sbr.rel (0) target = $region9
    $region8: #{tpu_custom_call.1} parent=1 // pred_region
      %s25 = ssub.s32 64, 64
      %26 = vsyncadd [#allocation6], %s25
      %s28 = sshll.u32 [#allocation5], 4
      %s29 = int_to_ptr.vmem [resolvable:$true] %s28
      %31 = dma.hbm_to_vmem [thread:$0]  %s1, 64, %s29, [#allocation6]
    $region9: #{tpu_custom_call.1} parent=1 // pred_fallthru
      _
    // Predicated region
    $region10: #{tpu_custom_call.1} parent=1 // pred_check
      _
    $region11: #{tpu_custom_call.1} parent=1 // pred_check_branch
      %33 = sbr.rel (0) target = $region13
    $region12: #{tpu_custom_call.1} parent=1 // pred_region
      %34 = dma.done [#allocation3], 3072
    $region13: #{tpu_custom_call.1} parent=1 // pred_fallthru
      _
    // Predicated region
    $region14: #{tpu_custom_call.1} parent=1 // pred_check
      _
    $region15: #{tpu_custom_call.1} parent=1 // pred_check_branch
      %36 = sbr.rel (0) target = $region17
    $region16: #{tpu_custom_call.1} parent=1 // pred_region
      %37 = dma.done [#allocation6], 64
    $region17: #{tpu_custom_call.1} parent=1 // pred_fallthru
      _
    %v39 = vlaneseq
    %v40 = vshrl.u32 %v39, 7
    %v41 = vadd.s32 %v40, 8
    %v42 = vadd.s32 %v40, 16
    %v43 = vadd.s32 %v40, 24
    %v44 = vadd.s32 %v40, 32
    %v45 = vadd.s32 %v40, 40
    %v46 = vadd.s32 %v40, 48
    %v47 = vadd.s32 %v40, 56
    %v48 = vadd.s32 %v40, 64
    %v49 = vadd.s32 %v40, 72
    %v50 = vadd.s32 %v40, 80
    %v51 = vadd.s32 %v40, 88
    %v52 = vadd.s32 %v40, 96
    %v53 = vadd.s32 %v40, 104
    %v54 = vadd.s32 %v40, 112
    %v55 = vadd.s32 %v40, 120
    %v56 = vld [vmem:[#allocation5] sm:$0x1]
    %v57 = vlaneseq
    %v58 = vshrl.u32 %v57, 7
    %v59 = vsub.s32 0, %v58
    %v60 = vrot.slane %v56, %v59
    %vm61 = vcmp.eq.s32.totalorder %v40, %v60
    %vm62 = vcmp.eq.s32.totalorder %v41, %v60
    %vm63 = vcmp.eq.s32.totalorder %v42, %v60
    %vm64 = vcmp.eq.s32.totalorder %v43, %v60
    %vm65 = vcmp.eq.s32.totalorder %v44, %v60
    %vm66 = vcmp.eq.s32.totalorder %v45, %v60
    %vm67 = vcmp.eq.s32.totalorder %v46, %v60
    %vm68 = vcmp.eq.s32.totalorder %v47, %v60
    %vm69 = vcmp.eq.s32.totalorder %v48, %v60
    %vm70 = vcmp.eq.s32.totalorder %v49, %v60
    %vm71 = vcmp.eq.s32.totalorder %v50, %v60
    %vm72 = vcmp.eq.s32.totalorder %v51, %v60
    %vm73 = vcmp.eq.s32.totalorder %v52, %v60
    %vm74 = vcmp.eq.s32.totalorder %v53, %v60
    %vm75 = vcmp.eq.s32.totalorder %v54, %v60
    %vm76 = vcmp.eq.s32.totalorder %v55, %v60
    %v77 = vsel %vm61, 1.0, 0.0
    %v78 = vsel %vm62, 1.0, 0.0
    %v79 = vsel %vm63, 1.0, 0.0
    %v80 = vsel %vm64, 1.0, 0.0
    %v81 = vsel %vm65, 1.0, 0.0
    %v82 = vsel %vm66, 1.0, 0.0
    %v83 = vsel %vm67, 1.0, 0.0
    %v84 = vsel %vm68, 1.0, 0.0
    %v85 = vsel %vm69, 1.0, 0.0
    %v86 = vsel %vm70, 1.0, 0.0
    %v87 = vsel %vm71, 1.0, 0.0
    %v88 = vsel %vm72, 1.0, 0.0
    %v89 = vsel %vm73, 1.0, 0.0
    %v90 = vsel %vm74, 1.0, 0.0
    %v91 = vsel %vm75, 1.0, 0.0
    %v92 = vsel %vm76, 1.0, 0.0
    %v93 = vpack.c.bf16 %v78, %v77
    %v94 = vpack.c.bf16 %v80, %v79
    %v95 = vpack.c.bf16 %v82, %v81
    %v96 = vpack.c.bf16 %v84, %v83
    %v97 = vpack.c.bf16 %v86, %v85
    %v98 = vpack.c.bf16 %v88, %v87
    %v99 = vpack.c.bf16 %v90, %v89
    %v100 = vpack.c.bf16 %v92, %v91
    %s101 = scalar_lea.vmem [#allocation2], 16
    %v102 = vld [vmem:[%s101] sm:$0xf]
    %v103 = vld [vmem:[%s101 + $0x4] sm:$0xf]
    %v104 = vld [vmem:[%s101 + $0x8] sm:$0xf]
    %v105 = vld [vmem:[%s101 + $0xc] sm:$0xf]
    %s106 = scalar_lea.vmem [#allocation2], 80
    %v107 = vld [vmem:[%s106] sm:$0xf]
    %v108 = vld [vmem:[%s106 + $0x4] sm:$0xf]
    %v109 = vld [vmem:[%s106 + $0x8] sm:$0xf]
    %v110 = vld [vmem:[%s106 + $0xc] sm:$0xf]
    %v115 = vunpack.c.l.b16 %v107
    %v116 = vunpack.c.l.b16 %v108
    %v117 = vunpack.c.l.b16 %v109
    %v118 = vunpack.c.l.b16 %v110
    %v119 = vpack.c.b16 %v116, %v115
    %v120 = vpack.c.b16 %v118, %v117
    %123 = vmatprep.subr.bf16.mxu0 0
    %124 = vmatpush1.bf16.msra.mxu0 %v100
    %125 = vmatprep.subr.bf16.mxu0 0
    %126 = vmatpush1.bf16.msra.mxu0 %v99
    %127 = vmatprep.subr.bf16.mxu0 0
    %128 = vmatpush1.bf16.msra.mxu0 %v98
    %129 = vmatprep.subr.bf16.mxu0 0
    %130 = vmatpush1.bf16.msra.mxu0 %v97
    %131 = vmatprep.subr.bf16.mxu0 0
    %132 = vmatpush1.bf16.msra.mxu0 %v96
    %133 = vmatprep.subr.bf16.mxu0 0
    %134 = vmatpush1.bf16.msra.mxu0 %v95
    %135 = vmatprep.subr.bf16.mxu0 0
    %136 = vmatpush1.bf16.msra.mxu0 %v94
    %137 = vmatprep.subr.bf16.mxu0 0
    %138 = vmatpush1.bf16.msra.mxu0 %v93
    %139 = vmatprep.subr.bf16.mxu0 0
    %140 = vmatpush2.bf16.msra.mxu0 0
    %141 = vmatprep.subr.bf16.mxu0 0
    %142 = vmatpush2.bf16.msra.mxu0 0
    %143 = vmatprep.subr.bf16.mxu0 0
    %144 = vmatpush2.bf16.msra.mxu0 0
    %145 = vmatprep.subr.bf16.mxu0 0
    %146 = vmatpush2.bf16.msra.mxu0 0
    %147 = vmatprep.subr.bf16.mxu0 0
    %148 = vmatpush2.bf16.msra.mxu0 0
    %149 = vmatprep.subr.bf16.mxu0 0
    %150 = vmatpush2.bf16.msra.mxu0 0
    %151 = vmatprep.subr.bf16.mxu0 0
    %152 = vmatpush2.bf16.msra.mxu0 0
    %153 = vmatprep.subr.bf16.mxu0 0
    %154 = vmatpush2.bf16.msra.mxu0 0
    %155 = vmatprep.mubr.bf16.mxu0 0
    %156 = vmatmul.mubr.bf16.gmra.mxu0 %v119
    %v157 = vpop.f32.mrf.mxu0
    %v158 = vadd.f32 0.0, %v157
    %v159 = vpop.f32.mrf.mxu0
    %v160 = vpop.f32.mrf.mxu0
    %v161 = vadd.f32 0.0, %v160
    %v162 = vpop.f32.mrf.mxu0
    %163 = vmatprep.mubr.bf16.mxu0 0
    %164 = vmatmul.mubr.bf16.gmra.mxu0 %v120
    %v165 = vpop.f32.mrf.mxu0
    %v166 = vadd.f32 0.0, %v165
    %v167 = vpop.f32.mrf.mxu0
    %v168 = vpop.f32.mrf.mxu0
    %v169 = vadd.f32 0.0, %v168
    %v170 = vpop.f32.mrf.mxu0
    %171 = vdwg.mxu0
    %v176 = vunpack.c.l.b16 %v102
    %v177 = vunpack.c.l.b16 %v103
    %v178 = vunpack.c.l.b16 %v104
    %v179 = vunpack.c.l.b16 %v105
    %v180 = vpack.c.b16 %v177, %v176
    %v181 = vpack.c.b16 %v179, %v178
    %184 = vmatprep.subr.bf16.mxu0 0
    %185 = vmatpush1.bf16.msra.mxu0 %v100
    %186 = vmatprep.subr.bf16.mxu0 0
    %187 = vmatpush1.bf16.msra.mxu0 %v99
    %188 = vmatprep.subr.bf16.mxu0 0
    %189 = vmatpush1.bf16.msra.mxu0 %v98
    %190 = vmatprep.subr.bf16.mxu0 0
    %191 = vmatpush1.bf16.msra.mxu0 %v97
    %192 = vmatprep.subr.bf16.mxu0 0
    %193 = vmatpush1.bf16.msra.mxu0 %v96
    %194 = vmatprep.subr.bf16.mxu0 0
    %195 = vmatpush1.bf16.msra.mxu0 %v95
    %196 = vmatprep.subr.bf16.mxu0 0
    %197 = vmatpush1.bf16.msra.mxu0 %v94
    %198 = vmatprep.subr.bf16.mxu0 0
    %199 = vmatpush1.bf16.msra.mxu0 %v93
    %200 = vmatprep.subr.bf16.mxu0 0
    %201 = vmatpush2.bf16.msra.mxu0 0
    %202 = vmatprep.subr.bf16.mxu0 0
    %203 = vmatpush2.bf16.msra.mxu0 0
    %204 = vmatprep.subr.bf16.mxu0 0
    %205 = vmatpush2.bf16.msra.mxu0 0
    %206 = vmatprep.subr.bf16.mxu0 0
    %207 = vmatpush2.bf16.msra.mxu0 0
    %208 = vmatprep.subr.bf16.mxu0 0
    %209 = vmatpush2.bf16.msra.mxu0 0
    %210 = vmatprep.subr.bf16.mxu0 0
    %211 = vmatpush2.bf16.msra.mxu0 0
    %212 = vmatprep.subr.bf16.mxu0 0
    %213 = vmatpush2.bf16.msra.mxu0 0
    %214 = vmatprep.subr.bf16.mxu0 0
    %215 = vmatpush2.bf16.msra.mxu0 0
    %216 = vmatprep.mubr.bf16.mxu0 0
    %217 = vmatmul.mubr.bf16.gmra.mxu0 %v180
    %v218 = vpop.f32.mrf.mxu0
    %v219 = vadd.f32 %v158, %v218
    %v220 = vpop.f32.mrf.mxu0
    %v221 = vpop.f32.mrf.mxu0
    %v222 = vadd.f32 %v161, %v221
    %v223 = vpop.f32.mrf.mxu0
    %224 = vmatprep.mubr.bf16.mxu0 0
    %225 = vmatmul.mubr.bf16.gmra.mxu0 %v181
    %v226 = vpop.f32.mrf.mxu0
    %v227 = vadd.f32 %v166, %v226
    %v228 = vpop.f32.mrf.mxu0
    %v229 = vpop.f32.mrf.mxu0
    %v230 = vadd.f32 %v169, %v229
    %v231 = vpop.f32.mrf.mxu0
    %232 = vdwg.mxu0
    %s233 = scalar_lea.vmem [#allocation2], 144
    %v234 = vld [vmem:[%s233] sm:$0xf]
    %v235 = vld [vmem:[%s233 + $0x4] sm:$0xf]
    %v236 = vld [vmem:[%s233 + $0x8] sm:$0xf]
    %v237 = vld [vmem:[%s233 + $0xc] sm:$0xf]
    %v242 = vunpack.c.l.b16 %v234
    %v243 = vunpack.c.l.b16 %v235
    %v244 = vunpack.c.l.b16 %v236
    %v245 = vunpack.c.l.b16 %v237
    %v246 = vpack.c.b16 %v243, %v242
    %v247 = vpack.c.b16 %v245, %v244
    %250 = vmatprep.subr.bf16.mxu0 0
    %251 = vmatpush1.bf16.msra.mxu0 %v100
    %252 = vmatprep.subr.bf16.mxu0 0
    %253 = vmatpush1.bf16.msra.mxu0 %v99
    %254 = vmatprep.subr.bf16.mxu0 0
    %255 = vmatpush1.bf16.msra.mxu0 %v98
    %256 = vmatprep.subr.bf16.mxu0 0
    %257 = vmatpush1.bf16.msra.mxu0 %v97
    %258 = vmatprep.subr.bf16.mxu0 0
    %259 = vmatpush1.bf16.msra.mxu0 %v96
    %260 = vmatprep.subr.bf16.mxu0 0
    %261 = vmatpush1.bf16.msra.mxu0 %v95
    %262 = vmatprep.subr.bf16.mxu0 0
    %263 = vmatpush1.bf16.msra.mxu0 %v94
    %264 = vmatprep.subr.bf16.mxu0 0
    %265 = vmatpush1.bf16.msra.mxu0 %v93
    %266 = vmatprep.subr.bf16.mxu0 0
    %267 = vmatpush2.bf16.msra.mxu0 0
    %268 = vmatprep.subr.bf16.mxu0 0
    %269 = vmatpush2.bf16.msra.mxu0 0
    %270 = vmatprep.subr.bf16.mxu0 0
    %271 = vmatpush2.bf16.msra.mxu0 0
    %272 = vmatprep.subr.bf16.mxu0 0
    %273 = vmatpush2.bf16.msra.mxu0 0
    %274 = vmatprep.subr.bf16.mxu0 0
    %275 = vmatpush2.bf16.msra.mxu0 0
    %276 = vmatprep.subr.bf16.mxu0 0
    %277 = vmatpush2.bf16.msra.mxu0 0
    %278 = vmatprep.subr.bf16.mxu0 0
    %279 = vmatpush2.bf16.msra.mxu0 0
    %280 = vmatprep.subr.bf16.mxu0 0
    %281 = vmatpush2.bf16.msra.mxu0 0
    %282 = vmatprep.mubr.bf16.mxu0 0
    %283 = vmatmul.mubr.bf16.gmra.mxu0 %v246
    %v284 = vpop.f32.mrf.mxu0
    %v285 = vadd.f32 0.0, %v284
    %v286 = vpop.f32.mrf.mxu0
    %v287 = vpop.f32.mrf.mxu0
    %v288 = vadd.f32 0.0, %v287
    %v289 = vpop.f32.mrf.mxu0
    %290 = vmatprep.mubr.bf16.mxu0 0
    %291 = vmatmul.mubr.bf16.gmra.mxu0 %v247
    %v292 = vpop.f32.mrf.mxu0
    %v293 = vadd.f32 0.0, %v292
    %v294 = vpop.f32.mrf.mxu0
    %v295 = vpop.f32.mrf.mxu0
    %v296 = vadd.f32 0.0, %v295
    %v297 = vpop.f32.mrf.mxu0
    %298 = vdwg.mxu0
    %v299 = vadd.f32 %v219, %v285
    %v300 = vadd.f32 %v222, %v288
    %v301 = vadd.f32 %v227, %v293
    %v302 = vadd.f32 %v230, %v296
    %v303 = vld [vmem:[#allocation5 + $0x1] sm:$0x1]
    %v304 = vlaneseq
    %v305 = vshrl.u32 %v304, 7
    %v306 = vsub.s32 0, %v305
    %v307 = vrot.slane %v303, %v306
    %vm308 = vcmp.eq.s32.totalorder %v40, %v307
    %vm309 = vcmp.eq.s32.totalorder %v41, %v307
    %vm310 = vcmp.eq.s32.totalorder %v42, %v307
    %vm311 = vcmp.eq.s32.totalorder %v43, %v307
    %vm312 = vcmp.eq.s32.totalorder %v44, %v307
    %vm313 = vcmp.eq.s32.totalorder %v45, %v307
    %vm314 = vcmp.eq.s32.totalorder %v46, %v307
    %vm315 = vcmp.eq.s32.totalorder %v47, %v307
    %vm316 = vcmp.eq.s32.totalorder %v48, %v307
    %vm317 = vcmp.eq.s32.totalorder %v49, %v307
    %vm318 = vcmp.eq.s32.totalorder %v50, %v307
    %vm319 = vcmp.eq.s32.totalorder %v51, %v307
    %vm320 = vcmp.eq.s32.totalorder %v52, %v307
    %vm321 = vcmp.eq.s32.totalorder %v53, %v307
    %vm322 = vcmp.eq.s32.totalorder %v54, %v307
    %vm323 = vcmp.eq.s32.totalorder %v55, %v307
    %v324 = vsel %vm308, 1.0, 0.0
    %v325 = vsel %vm309, 1.0, 0.0
    %v326 = vsel %vm310, 1.0, 0.0
    %v327 = vsel %vm311, 1.0, 0.0
    %v328 = vsel %vm312, 1.0, 0.0
    %v329 = vsel %vm313, 1.0, 0.0
    %v330 = vsel %vm314, 1.0, 0.0
    %v331 = vsel %vm315, 1.0, 0.0
    %v332 = vsel %vm316, 1.0, 0.0
    %v333 = vsel %vm317, 1.0, 0.0
    %v334 = vsel %vm318, 1.0, 0.0
    %v335 = vsel %vm319, 1.0, 0.0
    %v336 = vsel %vm320, 1.0, 0.0
    %v337 = vsel %vm321, 1.0, 0.0
    %v338 = vsel %vm322, 1.0, 0.0
    %v339 = vsel %vm323, 1.0, 0.0
    %v340 = vpack.c.bf16 %v325, %v324
    %v341 = vpack.c.bf16 %v327, %v326
    %v342 = vpack.c.bf16 %v329, %v328
    %v343 = vpack.c.bf16 %v331, %v330
    %v344 = vpack.c.bf16 %v333, %v332
    %v345 = vpack.c.bf16 %v335, %v334
    %v346 = vpack.c.bf16 %v337, %v336
    %v347 = vpack.c.bf16 %v339, %v338
    %v348 = vld [vmem:[#allocation2] sm:$0xf]
    %v349 = vld [vmem:[#allocation2 + $0x4] sm:$0xf]
    %v350 = vld [vmem:[#allocation2 + $0x8] sm:$0xf]
    %v351 = vld [vmem:[#allocation2 + $0xc] sm:$0xf]
    %s352 = scalar_lea.vmem [#allocation2], 64
    %v353 = vld [vmem:[%s352] sm:$0xf]
    %v354 = vld [vmem:[%s352 + $0x4] sm:$0xf]
    %v355 = vld [vmem:[%s352 + $0x8] sm:$0xf]
    %v356 = vld [vmem:[%s352 + $0xc] sm:$0xf]
    %v361 = vunpack.c.l.b16 %v353
    %v362 = vunpack.c.l.b16 %v354
    %v363 = vunpack.c.l.b16 %v355
    %v364 = vunpack.c.l.b16 %v356
    %v365 = vpack.c.b16 %v362, %v361
    %v366 = vpack.c.b16 %v364, %v363
    %369 = vmatprep.subr.bf16.mxu0 0
    %370 = vmatpush1.bf16.msra.mxu0 %v347
    %371 = vmatprep.subr.bf16.mxu0 0
    %372 = vmatpush1.bf16.msra.mxu0 %v346
    %373 = vmatprep.subr.bf16.mxu0 0
    %374 = vmatpush1.bf16.msra.mxu0 %v345
    %375 = vmatprep.subr.bf16.mxu0 0
    %376 = vmatpush1.bf16.msra.mxu0 %v344
    %377 = vmatprep.subr.bf16.mxu0 0
    %378 = vmatpush1.bf16.msra.mxu0 %v343
    %379 = vmatprep.subr.bf16.mxu0 0
    %380 = vmatpush1.bf16.msra.mxu0 %v342
    %381 = vmatprep.subr.bf16.mxu0 0
    %382 = vmatpush1.bf16.msra.mxu0 %v341
    %383 = vmatprep.subr.bf16.mxu0 0
    %384 = vmatpush1.bf16.msra.mxu0 %v340
    %385 = vmatprep.subr.bf16.mxu0 0
    %386 = vmatpush2.bf16.msra.mxu0 0
    %387 = vmatprep.subr.bf16.mxu0 0
    %388 = vmatpush2.bf16.msra.mxu0 0
    %389 = vmatprep.subr.bf16.mxu0 0
    %390 = vmatpush2.bf16.msra.mxu0 0
    %391 = vmatprep.subr.bf16.mxu0 0
    %392 = vmatpush2.bf16.msra.mxu0 0
    %393 = vmatprep.subr.bf16.mxu0 0
    %394 = vmatpush2.bf16.msra.mxu0 0
    %395 = vmatprep.subr.bf16.mxu0 0
    %396 = vmatpush2.bf16.msra.mxu0 0
    %397 = vmatprep.subr.bf16.mxu0 0
    %398 = vmatpush2.bf16.msra.mxu0 0
    %399 = vmatprep.subr.bf16.mxu0 0
    %400 = vmatpush2.bf16.msra.mxu0 0
    %401 = vmatprep.mubr.bf16.mxu0 0
    %402 = vmatmul.mubr.bf16.gmra.mxu0 %v365
    %v403 = vpop.f32.mrf.mxu0
    %v404 = vadd.f32 0.0, %v403
    %v405 = vpop.f32.mrf.mxu0
    %v406 = vpop.f32.mrf.mxu0
    %v407 = vadd.f32 0.0, %v406
    %v408 = vpop.f32.mrf.mxu0
    %409 = vmatprep.mubr.bf16.mxu0 0
    %410 = vmatmul.mubr.bf16.gmra.mxu0 %v366
    %v411 = vpop.f32.mrf.mxu0
    %v412 = vadd.f32 0.0, %v411
    %v413 = vpop.f32.mrf.mxu0
    %v414 = vpop.f32.mrf.mxu0
    %v415 = vadd.f32 0.0, %v414
    %v416 = vpop.f32.mrf.mxu0
    %417 = vdwg.mxu0
    %v422 = vunpack.c.l.b16 %v348
    %v423 = vunpack.c.l.b16 %v349
    %v424 = vunpack.c.l.b16 %v350
    %v425 = vunpack.c.l.b16 %v351
    %v426 = vpack.c.b16 %v423, %v422
    %v427 = vpack.c.b16 %v425, %v424
    %430 = vmatprep.subr.bf16.mxu0 0
    %431 = vmatpush1.bf16.msra.mxu0 %v347
    %432 = vmatprep.subr.bf16.mxu0 0
    %433 = vmatpush1.bf16.msra.mxu0 %v346
    %434 = vmatprep.subr.bf16.mxu0 0
    %435 = vmatpush1.bf16.msra.mxu0 %v345
    %436 = vmatprep.subr.bf16.mxu0 0
    %437 = vmatpush1.bf16.msra.mxu0 %v344
    %438 = vmatprep.subr.bf16.mxu0 0
    %439 = vmatpush1.bf16.msra.mxu0 %v343
    %440 = vmatprep.subr.bf16.mxu0 0
    %441 = vmatpush1.bf16.msra.mxu0 %v342
    %442 = vmatprep.subr.bf16.mxu0 0
    %443 = vmatpush1.bf16.msra.mxu0 %v341
    %444 = vmatprep.subr.bf16.mxu0 0
    %445 = vmatpush1.bf16.msra.mxu0 %v340
    %446 = vmatprep.subr.bf16.mxu0 0
    %447 = vmatpush2.bf16.msra.mxu0 0
    %448 = vmatprep.subr.bf16.mxu0 0
    %449 = vmatpush2.bf16.msra.mxu0 0
    %450 = vmatprep.subr.bf16.mxu0 0
    %451 = vmatpush2.bf16.msra.mxu0 0
    %452 = vmatprep.subr.bf16.mxu0 0
    %453 = vmatpush2.bf16.msra.mxu0 0
    %454 = vmatprep.subr.bf16.mxu0 0
    %455 = vmatpush2.bf16.msra.mxu0 0
    %456 = vmatprep.subr.bf16.mxu0 0
    %457 = vmatpush2.bf16.msra.mxu0 0
    %458 = vmatprep.subr.bf16.mxu0 0
    %459 = vmatpush2.bf16.msra.mxu0 0
    %460 = vmatprep.subr.bf16.mxu0 0
    %461 = vmatpush2.bf16.msra.mxu0 0
    %462 = vmatprep.mubr.bf16.mxu0 0
    %463 = vmatmul.mubr.bf16.gmra.mxu0 %v426
    %v464 = vpop.f32.mrf.mxu0
    %v465 = vadd.f32 %v404, %v464
    %v466 = vpop.f32.mrf.mxu0
    %v467 = vpop.f32.mrf.mxu0
    %v468 = vadd.f32 %v407, %v467
    %v469 = vpop.f32.mrf.mxu0
    %470 = vmatprep.mubr.bf16.mxu0 0
    %471 = vmatmul.mubr.bf16.gmra.mxu0 %v427
    %v472 = vpop.f32.mrf.mxu0
    %v473 = vadd.f32 %v412, %v472
    %v474 = vpop.f32.mrf.mxu0
    %v475 = vpop.f32.mrf.mxu0
    %v476 = vadd.f32 %v415, %v475
    %v477 = vpop.f32.mrf.mxu0
    %478 = vdwg.mxu0
    %s479 = scalar_lea.vmem [#allocation2], 128
    %v480 = vld [vmem:[%s479] sm:$0xf]
    %v481 = vld [vmem:[%s479 + $0x4] sm:$0xf]
    %v482 = vld [vmem:[%s479 + $0x8] sm:$0xf]
    %v483 = vld [vmem:[%s479 + $0xc] sm:$0xf]
    %v488 = vunpack.c.l.b16 %v480
    %v489 = vunpack.c.l.b16 %v481
    %v490 = vunpack.c.l.b16 %v482
    %v491 = vunpack.c.l.b16 %v483
    %v492 = vpack.c.b16 %v489, %v488
    %v493 = vpack.c.b16 %v491, %v490
    %496 = vmatprep.subr.bf16.mxu0 0
    %497 = vmatpush1.bf16.msra.mxu0 %v347
    %498 = vmatprep.subr.bf16.mxu0 0
    %499 = vmatpush1.bf16.msra.mxu0 %v346
    %500 = vmatprep.subr.bf16.mxu0 0
    %501 = vmatpush1.bf16.msra.mxu0 %v345
    %502 = vmatprep.subr.bf16.mxu0 0
    %503 = vmatpush1.bf16.msra.mxu0 %v344
    %504 = vmatprep.subr.bf16.mxu0 0
    %505 = vmatpush1.bf16.msra.mxu0 %v343
    %506 = vmatprep.subr.bf16.mxu0 0
    %507 = vmatpush1.bf16.msra.mxu0 %v342
    %508 = vmatprep.subr.bf16.mxu0 0
    %509 = vmatpush1.bf16.msra.mxu0 %v341
    %510 = vmatprep.subr.bf16.mxu0 0
    %511 = vmatpush1.bf16.msra.mxu0 %v340
    %512 = vmatprep.subr.bf16.mxu0 0
    %513 = vmatpush2.bf16.msra.mxu0 0
    %514 = vmatprep.subr.bf16.mxu0 0
    %515 = vmatpush2.bf16.msra.mxu0 0
    %516 = vmatprep.subr.bf16.mxu0 0
    %517 = vmatpush2.bf16.msra.mxu0 0
    %518 = vmatprep.subr.bf16.mxu0 0
    %519 = vmatpush2.bf16.msra.mxu0 0
    %520 = vmatprep.subr.bf16.mxu0 0
    %521 = vmatpush2.bf16.msra.mxu0 0
    %522 = vmatprep.subr.bf16.mxu0 0
    %523 = vmatpush2.bf16.msra.mxu0 0
    %524 = vmatprep.subr.bf16.mxu0 0
    %525 = vmatpush2.bf16.msra.mxu0 0
    %526 = vmatprep.subr.bf16.mxu0 0
    %527 = vmatpush2.bf16.msra.mxu0 0
    %528 = vmatprep.mubr.bf16.mxu0 0
    %529 = vmatmul.mubr.bf16.gmra.mxu0 %v492
    %v530 = vpop.f32.mrf.mxu0
    %v531 = vadd.f32 0.0, %v530
    %v532 = vpop.f32.mrf.mxu0
    %v533 = vpop.f32.mrf.mxu0
    %v534 = vadd.f32 0.0, %v533
    %v535 = vpop.f32.mrf.mxu0
    %536 = vmatprep.mubr.bf16.mxu0 0
    %537 = vmatmul.mubr.bf16.gmra.mxu0 %v493
    %v538 = vpop.f32.mrf.mxu0
    %v539 = vadd.f32 0.0, %v538
    %v540 = vpop.f32.mrf.mxu0
    %v541 = vpop.f32.mrf.mxu0
    %v542 = vadd.f32 0.0, %v541
    %v543 = vpop.f32.mrf.mxu0
    %544 = vdwg.mxu0
    %v545 = vadd.f32 %v465, %v531
    %v546 = vadd.f32 %v468, %v534
    %v547 = vadd.f32 %v473, %v539
    %v548 = vadd.f32 %v476, %v542
    %v549 = vmul.f32 %v299, %v545
    %v550 = vmul.f32 %v300, %v546
    %v551 = vmul.f32 %v301, %v547
    %v552 = vmul.f32 %v302, %v548
    %v553 = vadd.f32 %v549, 0.0
    %v554 = vadd.f32 %v550, 0.0
    %v555 = vadd.f32 %v551, 0.0
    %v556 = vadd.f32 %v552, 0.0
    %s557 = scalar_lea.vmem [#allocation2], 32
    %v558 = vld [vmem:[%s557] sm:$0xf]
    %v559 = vld [vmem:[%s557 + $0x4] sm:$0xf]
    %v560 = vld [vmem:[%s557 + $0x8] sm:$0xf]
    %v561 = vld [vmem:[%s557 + $0xc] sm:$0xf]
    %s562 = scalar_lea.vmem [#allocation2], 96
    %v563 = vld [vmem:[%s562] sm:$0xf]
    %v564 = vld [vmem:[%s562 + $0x4] sm:$0xf]
    %v565 = vld [vmem:[%s562 + $0x8] sm:$0xf]
    %v566 = vld [vmem:[%s562 + $0xc] sm:$0xf]
    %v571 = vunpack.c.l.b16 %v563
    %v572 = vunpack.c.l.b16 %v564
    %v573 = vunpack.c.l.b16 %v565
    %v574 = vunpack.c.l.b16 %v566
    %v575 = vpack.c.b16 %v572, %v571
    %v576 = vpack.c.b16 %v574, %v573
    %579 = vmatprep.subr.bf16.mxu0 0
    %580 = vmatpush1.bf16.msra.mxu0 %v100
    %581 = vmatprep.subr.bf16.mxu0 0
    %582 = vmatpush1.bf16.msra.mxu0 %v99
    %583 = vmatprep.subr.bf16.mxu0 0
    %584 = vmatpush1.bf16.msra.mxu0 %v98
    %585 = vmatprep.subr.bf16.mxu0 0
    %586 = vmatpush1.bf16.msra.mxu0 %v97
    %587 = vmatprep.subr.bf16.mxu0 0
    %588 = vmatpush1.bf16.msra.mxu0 %v96
    %589 = vmatprep.subr.bf16.mxu0 0
    %590 = vmatpush1.bf16.msra.mxu0 %v95
    %591 = vmatprep.subr.bf16.mxu0 0
    %592 = vmatpush1.bf16.msra.mxu0 %v94
    %593 = vmatprep.subr.bf16.mxu0 0
    %594 = vmatpush1.bf16.msra.mxu0 %v93
    %595 = vmatprep.subr.bf16.mxu0 0
    %596 = vmatpush2.bf16.msra.mxu0 0
    %597 = vmatprep.subr.bf16.mxu0 0
    %598 = vmatpush2.bf16.msra.mxu0 0
    %599 = vmatprep.subr.bf16.mxu0 0
    %600 = vmatpush2.bf16.msra.mxu0 0
    %601 = vmatprep.subr.bf16.mxu0 0
    %602 = vmatpush2.bf16.msra.mxu0 0
    %603 = vmatprep.subr.bf16.mxu0 0
    %604 = vmatpush2.bf16.msra.mxu0 0
    %605 = vmatprep.subr.bf16.mxu0 0
    %606 = vmatpush2.bf16.msra.mxu0 0
    %607 = vmatprep.subr.bf16.mxu0 0
    %608 = vmatpush2.bf16.msra.mxu0 0
    %609 = vmatprep.subr.bf16.mxu0 0
    %610 = vmatpush2.bf16.msra.mxu0 0
    %611 = vmatprep.mubr.bf16.mxu0 0
    %612 = vmatmul.mubr.bf16.gmra.mxu0 %v575
    %v613 = vpop.f32.mrf.mxu0
    %v614 = vadd.f32 0.0, %v613
    %v615 = vpop.f32.mrf.mxu0
    %v616 = vpop.f32.mrf.mxu0
    %v617 = vadd.f32 0.0, %v616
    %v618 = vpop.f32.mrf.mxu0
    %619 = vmatprep.mubr.bf16.mxu0 0
    %620 = vmatmul.mubr.bf16.gmra.mxu0 %v576
    %v621 = vpop.f32.mrf.mxu0
    %v622 = vadd.f32 0.0, %v621
    %v623 = vpop.f32.mrf.mxu0
    %v624 = vpop.f32.mrf.mxu0
    %v625 = vadd.f32 0.0, %v624
    %v626 = vpop.f32.mrf.mxu0
    %627 = vdwg.mxu0
    %v632 = vunpack.c.l.b16 %v558
    %v633 = vunpack.c.l.b16 %v559
    %v634 = vunpack.c.l.b16 %v560
    %v635 = vunpack.c.l.b16 %v561
    %v636 = vpack.c.b16 %v633, %v632
    %v637 = vpack.c.b16 %v635, %v634
    %640 = vmatprep.subr.bf16.mxu0 0
    %641 = vmatpush1.bf16.msra.mxu0 %v100
    %642 = vmatprep.subr.bf16.mxu0 0
    %643 = vmatpush1.bf16.msra.mxu0 %v99
    %644 = vmatprep.subr.bf16.mxu0 0
    %645 = vmatpush1.bf16.msra.mxu0 %v98
    %646 = vmatprep.subr.bf16.mxu0 0
    %647 = vmatpush1.bf16.msra.mxu0 %v97
    %648 = vmatprep.subr.bf16.mxu0 0
    %649 = vmatpush1.bf16.msra.mxu0 %v96
    %650 = vmatprep.subr.bf16.mxu0 0
    %651 = vmatpush1.bf16.msra.mxu0 %v95
    %652 = vmatprep.subr.bf16.mxu0 0
    %653 = vmatpush1.bf16.msra.mxu0 %v94
    %654 = vmatprep.subr.bf16.mxu0 0
    %655 = vmatpush1.bf16.msra.mxu0 %v93
    %656 = vmatprep.subr.bf16.mxu0 0
    %657 = vmatpush2.bf16.msra.mxu0 0
    %658 = vmatprep.subr.bf16.mxu0 0
    %659 = vmatpush2.bf16.msra.mxu0 0
    %660 = vmatprep.subr.bf16.mxu0 0
    %661 = vmatpush2.bf16.msra.mxu0 0
    %662 = vmatprep.subr.bf16.mxu0 0
    %663 = vmatpush2.bf16.msra.mxu0 0
    %664 = vmatprep.subr.bf16.mxu0 0
    %665 = vmatpush2.bf16.msra.mxu0 0
    %666 = vmatprep.subr.bf16.mxu0 0
    %667 = vmatpush2.bf16.msra.mxu0 0
    %668 = vmatprep.subr.bf16.mxu0 0
    %669 = vmatpush2.bf16.msra.mxu0 0
    %670 = vmatprep.subr.bf16.mxu0 0
    %671 = vmatpush2.bf16.msra.mxu0 0
    %672 = vmatprep.mubr.bf16.mxu0 0
    %673 = vmatmul.mubr.bf16.gmra.mxu0 %v636
    %v674 = vpop.f32.mrf.mxu0
    %v675 = vadd.f32 %v614, %v674
    %v676 = vpop.f32.mrf.mxu0
    %v677 = vpop.f32.mrf.mxu0
    %v678 = vadd.f32 %v617, %v677
    %v679 = vpop.f32.mrf.mxu0
    %680 = vmatprep.mubr.bf16.mxu0 0
    %681 = vmatmul.mubr.bf16.gmra.mxu0 %v637
    %v682 = vpop.f32.mrf.mxu0
    %v683 = vadd.f32 %v622, %v682
    %v684 = vpop.f32.mrf.mxu0
    %v685 = vpop.f32.mrf.mxu0
    %v686 = vadd.f32 %v625, %v685
    %v687 = vpop.f32.mrf.mxu0
    %688 = vdwg.mxu0
    %s689 = scalar_lea.vmem [#allocation2], 160
    %v690 = vld [vmem:[%s689] sm:$0xf]
    %v691 = vld [vmem:[%s689 + $0x4] sm:$0xf]
    %v692 = vld [vmem:[%s689 + $0x8] sm:$0xf]
    %v693 = vld [vmem:[%s689 + $0xc] sm:$0xf]
    %v698 = vunpack.c.l.b16 %v690
    %v699 = vunpack.c.l.b16 %v691
    %v700 = vunpack.c.l.b16 %v692
    %v701 = vunpack.c.l.b16 %v693
    %v702 = vpack.c.b16 %v699, %v698
    %v703 = vpack.c.b16 %v701, %v700
    %706 = vmatprep.subr.bf16.mxu0 0
    %707 = vmatpush1.bf16.msra.mxu0 %v100
    %708 = vmatprep.subr.bf16.mxu0 0
    %709 = vmatpush1.bf16.msra.mxu0 %v99
    %710 = vmatprep.subr.bf16.mxu0 0
    %711 = vmatpush1.bf16.msra.mxu0 %v98
    %712 = vmatprep.subr.bf16.mxu0 0
    %713 = vmatpush1.bf16.msra.mxu0 %v97
    %714 = vmatprep.subr.bf16.mxu0 0
    %715 = vmatpush1.bf16.msra.mxu0 %v96
    %716 = vmatprep.subr.bf16.mxu0 0
    %717 = vmatpush1.bf16.msra.mxu0 %v95
    %718 = vmatprep.subr.bf16.mxu0 0
    %719 = vmatpush1.bf16.msra.mxu0 %v94
    %720 = vmatprep.subr.bf16.mxu0 0
    %721 = vmatpush1.bf16.msra.mxu0 %v93
    %722 = vmatprep.subr.bf16.mxu0 0
    %723 = vmatpush2.bf16.msra.mxu0 0
    %724 = vmatprep.subr.bf16.mxu0 0
    %725 = vmatpush2.bf16.msra.mxu0 0
    %726 = vmatprep.subr.bf16.mxu0 0
    %727 = vmatpush2.bf16.msra.mxu0 0
    %728 = vmatprep.subr.bf16.mxu0 0
    %729 = vmatpush2.bf16.msra.mxu0 0
    %730 = vmatprep.subr.bf16.mxu0 0
    %731 = vmatpush2.bf16.msra.mxu0 0
    %732 = vmatprep.subr.bf16.mxu0 0
    %733 = vmatpush2.bf16.msra.mxu0 0
    %734 = vmatprep.subr.bf16.mxu0 0
    %735 = vmatpush2.bf16.msra.mxu0 0
    %736 = vmatprep.subr.bf16.mxu0 0
    %737 = vmatpush2.bf16.msra.mxu0 0
    %738 = vmatprep.mubr.bf16.mxu0 0
    %739 = vmatmul.mubr.bf16.gmra.mxu0 %v702
    %v740 = vpop.f32.mrf.mxu0
    %v741 = vadd.f32 0.0, %v740
    %v742 = vpop.f32.mrf.mxu0
    %v743 = vpop.f32.mrf.mxu0
    %v744 = vadd.f32 0.0, %v743
    %v745 = vpop.f32.mrf.mxu0
    %746 = vmatprep.mubr.bf16.mxu0 0
    %747 = vmatmul.mubr.bf16.gmra.mxu0 %v703
    %v748 = vpop.f32.mrf.mxu0
    %v749 = vadd.f32 0.0, %v748
    %v750 = vpop.f32.mrf.mxu0
    %v751 = vpop.f32.mrf.mxu0
    %v752 = vadd.f32 0.0, %v751
    %v753 = vpop.f32.mrf.mxu0
    %754 = vdwg.mxu0
    %v755 = vadd.f32 %v675, %v741
    %v756 = vadd.f32 %v678, %v744
    %v757 = vadd.f32 %v683, %v749
    %v758 = vadd.f32 %v686, %v752
    %v759 = vld [vmem:[#allocation5 + $0x2] sm:$0x1]
    %v760 = vlaneseq
    %v761 = vshrl.u32 %v760, 7
    %v762 = vsub.s32 0, %v761
    %v763 = vrot.slane %v759, %v762
    %vm764 = vcmp.eq.s32.totalorder %v40, %v763
    %vm765 = vcmp.eq.s32.totalorder %v41, %v763
    %vm766 = vcmp.eq.s32.totalorder %v42, %v763
    %vm767 = vcmp.eq.s32.totalorder %v43, %v763
    %vm768 = vcmp.eq.s32.totalorder %v44, %v763
    %vm769 = vcmp.eq.s32.totalorder %v45, %v763
    %vm770 = vcmp.eq.s32.totalorder %v46, %v763
    %vm771 = vcmp.eq.s32.totalorder %v47, %v763
    %vm772 = vcmp.eq.s32.totalorder %v48, %v763
    %vm773 = vcmp.eq.s32.totalorder %v49, %v763
    %vm774 = vcmp.eq.s32.totalorder %v50, %v763
    %vm775 = vcmp.eq.s32.totalorder %v51, %v763
    %vm776 = vcmp.eq.s32.totalorder %v52, %v763
    %vm777 = vcmp.eq.s32.totalorder %v53, %v763
    %vm778 = vcmp.eq.s32.totalorder %v54, %v763
    %vm779 = vcmp.eq.s32.totalorder %v55, %v763
    %v780 = vsel %vm764, 1.0, 0.0
    %v781 = vsel %vm765, 1.0, 0.0
    %v782 = vsel %vm766, 1.0, 0.0
    %v783 = vsel %vm767, 1.0, 0.0
    %v784 = vsel %vm768, 1.0, 0.0
    %v785 = vsel %vm769, 1.0, 0.0
    %v786 = vsel %vm770, 1.0, 0.0
    %v787 = vsel %vm771, 1.0, 0.0
    %v788 = vsel %vm772, 1.0, 0.0
    %v789 = vsel %vm773, 1.0, 0.0
    %v790 = vsel %vm774, 1.0, 0.0
    %v791 = vsel %vm775, 1.0, 0.0
    %v792 = vsel %vm776, 1.0, 0.0
    %v793 = vsel %vm777, 1.0, 0.0
    %v794 = vsel %vm778, 1.0, 0.0
    %v795 = vsel %vm779, 1.0, 0.0
    %v796 = vpack.c.bf16 %v781, %v780
    %v797 = vpack.c.bf16 %v783, %v782
    %v798 = vpack.c.bf16 %v785, %v784
    %v799 = vpack.c.bf16 %v787, %v786
    %v800 = vpack.c.bf16 %v789, %v788
    %v801 = vpack.c.bf16 %v791, %v790
    %v802 = vpack.c.bf16 %v793, %v792
    %v803 = vpack.c.bf16 %v795, %v794
    %804 = vmatprep.subr.bf16.mxu0 0
    %805 = vmatpush1.bf16.msra.mxu0 %v803
    %806 = vmatprep.subr.bf16.mxu0 0
    %807 = vmatpush1.bf16.msra.mxu0 %v802
    %808 = vmatprep.subr.bf16.mxu0 0
    %809 = vmatpush1.bf16.msra.mxu0 %v801
    %810 = vmatprep.subr.bf16.mxu0 0
    %811 = vmatpush1.bf16.msra.mxu0 %v800
    %812 = vmatprep.subr.bf16.mxu0 0
    %813 = vmatpush1.bf16.msra.mxu0 %v799
    %814 = vmatprep.subr.bf16.mxu0 0
    %815 = vmatpush1.bf16.msra.mxu0 %v798
    %816 = vmatprep.subr.bf16.mxu0 0
    %817 = vmatpush1.bf16.msra.mxu0 %v797
    %818 = vmatprep.subr.bf16.mxu0 0
    %819 = vmatpush1.bf16.msra.mxu0 %v796
    %820 = vmatprep.subr.bf16.mxu0 0
    %821 = vmatpush2.bf16.msra.mxu0 0
    %822 = vmatprep.subr.bf16.mxu0 0
    %823 = vmatpush2.bf16.msra.mxu0 0
    %824 = vmatprep.subr.bf16.mxu0 0
    %825 = vmatpush2.bf16.msra.mxu0 0
    %826 = vmatprep.subr.bf16.mxu0 0
    %827 = vmatpush2.bf16.msra.mxu0 0
    %828 = vmatprep.subr.bf16.mxu0 0
    %829 = vmatpush2.bf16.msra.mxu0 0
    %830 = vmatprep.subr.bf16.mxu0 0
    %831 = vmatpush2.bf16.msra.mxu0 0
    %832 = vmatprep.subr.bf16.mxu0 0
    %833 = vmatpush2.bf16.msra.mxu0 0
    %834 = vmatprep.subr.bf16.mxu0 0
    %835 = vmatpush2.bf16.msra.mxu0 0
    %836 = vmatprep.mubr.bf16.mxu0 0
    %837 = vmatmul.mubr.bf16.gmra.mxu0 %v365
    %v838 = vpop.f32.mrf.mxu0
    %v839 = vadd.f32 0.0, %v838
    %v840 = vpop.f32.mrf.mxu0
    %v841 = vpop.f32.mrf.mxu0
    %v842 = vadd.f32 0.0, %v841
    %v843 = vpop.f32.mrf.mxu0
    %844 = vmatprep.mubr.bf16.mxu0 0
    %845 = vmatmul.mubr.bf16.gmra.mxu0 %v366
    %v846 = vpop.f32.mrf.mxu0
    %v847 = vadd.f32 0.0, %v846
    %v848 = vpop.f32.mrf.mxu0
    %v849 = vpop.f32.mrf.mxu0
    %v850 = vadd.f32 0.0, %v849
    %v851 = vpop.f32.mrf.mxu0
    %852 = vdwg.mxu0
    %853 = vmatprep.subr.bf16.mxu0 0
    %854 = vmatpush1.bf16.msra.mxu0 %v803
    %855 = vmatprep.subr.bf16.mxu0 0
    %856 = vmatpush1.bf16.msra.mxu0 %v802
    %857 = vmatprep.subr.bf16.mxu0 0
    %858 = vmatpush1.bf16.msra.mxu0 %v801
    %859 = vmatprep.subr.bf16.mxu0 0
    %860 = vmatpush1.bf16.msra.mxu0 %v800
    %861 = vmatprep.subr.bf16.mxu0 0
    %862 = vmatpush1.bf16.msra.mxu0 %v799
    %863 = vmatprep.subr.bf16.mxu0 0
    %864 = vmatpush1.bf16.msra.mxu0 %v798
    %865 = vmatprep.subr.bf16.mxu0 0
    %866 = vmatpush1.bf16.msra.mxu0 %v797
    %867 = vmatprep.subr.bf16.mxu0 0
    %868 = vmatpush1.bf16.msra.mxu0 %v796
    %869 = vmatprep.subr.bf16.mxu0 0
    %870 = vmatpush2.bf16.msra.mxu0 0
    %871 = vmatprep.subr.bf16.mxu0 0
    %872 = vmatpush2.bf16.msra.mxu0 0
    %873 = vmatprep.subr.bf16.mxu0 0
    %874 = vmatpush2.bf16.msra.mxu0 0
    %875 = vmatprep.subr.bf16.mxu0 0
    %876 = vmatpush2.bf16.msra.mxu0 0
    %877 = vmatprep.subr.bf16.mxu0 0
    %878 = vmatpush2.bf16.msra.mxu0 0
    %879 = vmatprep.subr.bf16.mxu0 0
    %880 = vmatpush2.bf16.msra.mxu0 0
    %881 = vmatprep.subr.bf16.mxu0 0
    %882 = vmatpush2.bf16.msra.mxu0 0
    %883 = vmatprep.subr.bf16.mxu0 0
    %884 = vmatpush2.bf16.msra.mxu0 0
    %885 = vmatprep.mubr.bf16.mxu0 0
    %886 = vmatmul.mubr.bf16.gmra.mxu0 %v426
    %v887 = vpop.f32.mrf.mxu0
    %v888 = vadd.f32 %v839, %v887
    %v889 = vpop.f32.mrf.mxu0
    %v890 = vpop.f32.mrf.mxu0
    %v891 = vadd.f32 %v842, %v890
    %v892 = vpop.f32.mrf.mxu0
    %893 = vmatprep.mubr.bf16.mxu0 0
    %894 = vmatmul.mubr.bf16.gmra.mxu0 %v427
    %v895 = vpop.f32.mrf.mxu0
    %v896 = vadd.f32 %v847, %v895
    %v897 = vpop.f32.mrf.mxu0
    %v898 = vpop.f32.mrf.mxu0
    %v899 = vadd.f32 %v850, %v898
    %v900 = vpop.f32.mrf.mxu0
    %901 = vdwg.mxu0
    %902 = vmatprep.subr.bf16.mxu0 0
    %903 = vmatpush1.bf16.msra.mxu0 %v803
    %904 = vmatprep.subr.bf16.mxu0 0
    %905 = vmatpush1.bf16.msra.mxu0 %v802
    %906 = vmatprep.subr.bf16.mxu0 0
    %907 = vmatpush1.bf16.msra.mxu0 %v801
    %908 = vmatprep.subr.bf16.mxu0 0
    %909 = vmatpush1.bf16.msra.mxu0 %v800
    %910 = vmatprep.subr.bf16.mxu0 0
    %911 = vmatpush1.bf16.msra.mxu0 %v799
    %912 = vmatprep.subr.bf16.mxu0 0
    %913 = vmatpush1.bf16.msra.mxu0 %v798
    %914 = vmatprep.subr.bf16.mxu0 0
    %915 = vmatpush1.bf16.msra.mxu0 %v797
    %916 = vmatprep.subr.bf16.mxu0 0
    %917 = vmatpush1.bf16.msra.mxu0 %v796
    %918 = vmatprep.subr.bf16.mxu0 0
    %919 = vmatpush2.bf16.msra.mxu0 0
    %920 = vmatprep.subr.bf16.mxu0 0
    %921 = vmatpush2.bf16.msra.mxu0 0
    %922 = vmatprep.subr.bf16.mxu0 0
    %923 = vmatpush2.bf16.msra.mxu0 0
    %924 = vmatprep.subr.bf16.mxu0 0
    %925 = vmatpush2.bf16.msra.mxu0 0
    %926 = vmatprep.subr.bf16.mxu0 0
    %927 = vmatpush2.bf16.msra.mxu0 0
    %928 = vmatprep.subr.bf16.mxu0 0
    %929 = vmatpush2.bf16.msra.mxu0 0
    %930 = vmatprep.subr.bf16.mxu0 0
    %931 = vmatpush2.bf16.msra.mxu0 0
    %932 = vmatprep.subr.bf16.mxu0 0
    %933 = vmatpush2.bf16.msra.mxu0 0
    %934 = vmatprep.mubr.bf16.mxu0 0
    %935 = vmatmul.mubr.bf16.gmra.mxu0 %v492
    %v936 = vpop.f32.mrf.mxu0
    %v937 = vadd.f32 0.0, %v936
    %v938 = vpop.f32.mrf.mxu0
    %v939 = vpop.f32.mrf.mxu0
    %v940 = vadd.f32 0.0, %v939
    %v941 = vpop.f32.mrf.mxu0
    %942 = vmatprep.mubr.bf16.mxu0 0
    %943 = vmatmul.mubr.bf16.gmra.mxu0 %v493
    %v944 = vpop.f32.mrf.mxu0
    %v945 = vadd.f32 0.0, %v944
    %v946 = vpop.f32.mrf.mxu0
    %v947 = vpop.f32.mrf.mxu0
    %v948 = vadd.f32 0.0, %v947
    %v949 = vpop.f32.mrf.mxu0
    %950 = vdwg.mxu0
    %v951 = vadd.f32 %v888, %v937
    %v952 = vadd.f32 %v891, %v940
    %v953 = vadd.f32 %v896, %v945
    %v954 = vadd.f32 %v899, %v948
    %v955 = vmul.f32 %v755, %v951
    %v956 = vmul.f32 %v756, %v952
    %v957 = vmul.f32 %v757, %v953
    %v958 = vmul.f32 %v758, %v954
    %v959 = vadd.f32 %v553, %v955
    %v960 = vadd.f32 %v554, %v956
    %v961 = vadd.f32 %v555, %v957
    %v962 = vadd.f32 %v556, %v958
    %s963 = scalar_lea.vmem [#allocation2], 48
    %v964 = vld [vmem:[%s963] sm:$0xf]
    %v965 = vld [vmem:[%s963 + $0x4] sm:$0xf]
    %v966 = vld [vmem:[%s963 + $0x8] sm:$0xf]
    %v967 = vld [vmem:[%s963 + $0xc] sm:$0xf]
    %s968 = scalar_lea.vmem [#allocation2], 112
    %v969 = vld [vmem:[%s968] sm:$0xf]
    %v970 = vld [vmem:[%s968 + $0x4] sm:$0xf]
    %v971 = vld [vmem:[%s968 + $0x8] sm:$0xf]
    %v972 = vld [vmem:[%s968 + $0xc] sm:$0xf]
    %v977 = vunpack.c.l.b16 %v969
    %v978 = vunpack.c.l.b16 %v970
    %v979 = vunpack.c.l.b16 %v971
    %v980 = vunpack.c.l.b16 %v972
    %v981 = vpack.c.b16 %v978, %v977
    %v982 = vpack.c.b16 %v980, %v979
    %985 = vmatprep.subr.bf16.mxu0 0
    %986 = vmatpush1.bf16.msra.mxu0 %v100
    %987 = vmatprep.subr.bf16.mxu0 0
    %988 = vmatpush1.bf16.msra.mxu0 %v99
    %989 = vmatprep.subr.bf16.mxu0 0
    %990 = vmatpush1.bf16.msra.mxu0 %v98
    %991 = vmatprep.subr.bf16.mxu0 0
    %992 = vmatpush1.bf16.msra.mxu0 %v97
    %993 = vmatprep.subr.bf16.mxu0 0
    %994 = vmatpush1.bf16.msra.mxu0 %v96
    %995 = vmatprep.subr.bf16.mxu0 0
    %996 = vmatpush1.bf16.msra.mxu0 %v95
    %997 = vmatprep.subr.bf16.mxu0 0
    %998 = vmatpush1.bf16.msra.mxu0 %v94
    %999 = vmatprep.subr.bf16.mxu0 0
    %1000 = vmatpush1.bf16.msra.mxu0 %v93
    %1001 = vmatprep.subr.bf16.mxu0 0
    %1002 = vmatpush2.bf16.msra.mxu0 0
    %1003 = vmatprep.subr.bf16.mxu0 0
    %1004 = vmatpush2.bf16.msra.mxu0 0
    %1005 = vmatprep.subr.bf16.mxu0 0
    %1006 = vmatpush2.bf16.msra.mxu0 0
    %1007 = vmatprep.subr.bf16.mxu0 0
    %1008 = vmatpush2.bf16.msra.mxu0 0
    %1009 = vmatprep.subr.bf16.mxu0 0
    %1010 = vmatpush2.bf16.msra.mxu0 0
    %1011 = vmatprep.subr.bf16.mxu0 0
    %1012 = vmatpush2.bf16.msra.mxu0 0
    %1013 = vmatprep.subr.bf16.mxu0 0
    %1014 = vmatpush2.bf16.msra.mxu0 0
    %1015 = vmatprep.subr.bf16.mxu0 0
    %1016 = vmatpush2.bf16.msra.mxu0 0
    %1017 = vmatprep.mubr.bf16.mxu0 0
    %1018 = vmatmul.mubr.bf16.gmra.mxu0 %v981
    %v1019 = vpop.f32.mrf.mxu0
    %v1020 = vadd.f32 0.0, %v1019
    %v1021 = vpop.f32.mrf.mxu0
    %v1022 = vpop.f32.mrf.mxu0
    %v1023 = vadd.f32 0.0, %v1022
    %v1024 = vpop.f32.mrf.mxu0
    %1025 = vmatprep.mubr.bf16.mxu0 0
    %1026 = vmatmul.mubr.bf16.gmra.mxu0 %v982
    %v1027 = vpop.f32.mrf.mxu0
    %v1028 = vadd.f32 0.0, %v1027
    %v1029 = vpop.f32.mrf.mxu0
    %v1030 = vpop.f32.mrf.mxu0
    %v1031 = vadd.f32 0.0, %v1030
    %v1032 = vpop.f32.mrf.mxu0
    %1033 = vdwg.mxu0
    %v1038 = vunpack.c.l.b16 %v964
    %v1039 = vunpack.c.l.b16 %v965
    %v1040 = vunpack.c.l.b16 %v966
    %v1041 = vunpack.c.l.b16 %v967
    %v1042 = vpack.c.b16 %v1039, %v1038
    %v1043 = vpack.c.b16 %v1041, %v1040
    %1046 = vmatprep.subr.bf16.mxu0 0
    %1047 = vmatpush1.bf16.msra.mxu0 %v100
    %1048 = vmatprep.subr.bf16.mxu0 0
    %1049 = vmatpush1.bf16.msra.mxu0 %v99
    %1050 = vmatprep.subr.bf16.mxu0 0
    %1051 = vmatpush1.bf16.msra.mxu0 %v98
    %1052 = vmatprep.subr.bf16.mxu0 0
    %1053 = vmatpush1.bf16.msra.mxu0 %v97
    %1054 = vmatprep.subr.bf16.mxu0 0
    %1055 = vmatpush1.bf16.msra.mxu0 %v96
    %1056 = vmatprep.subr.bf16.mxu0 0
    %1057 = vmatpush1.bf16.msra.mxu0 %v95
    %1058 = vmatprep.subr.bf16.mxu0 0
    %1059 = vmatpush1.bf16.msra.mxu0 %v94
    %1060 = vmatprep.subr.bf16.mxu0 0
    %1061 = vmatpush1.bf16.msra.mxu0 %v93
    %1062 = vmatprep.subr.bf16.mxu0 0
    %1063 = vmatpush2.bf16.msra.mxu0 0
    %1064 = vmatprep.subr.bf16.mxu0 0
    %1065 = vmatpush2.bf16.msra.mxu0 0
    %1066 = vmatprep.subr.bf16.mxu0 0
    %1067 = vmatpush2.bf16.msra.mxu0 0
    %1068 = vmatprep.subr.bf16.mxu0 0
    %1069 = vmatpush2.bf16.msra.mxu0 0
    %1070 = vmatprep.subr.bf16.mxu0 0
    %1071 = vmatpush2.bf16.msra.mxu0 0
    %1072 = vmatprep.subr.bf16.mxu0 0
    %1073 = vmatpush2.bf16.msra.mxu0 0
    %1074 = vmatprep.subr.bf16.mxu0 0
    %1075 = vmatpush2.bf16.msra.mxu0 0
    %1076 = vmatprep.subr.bf16.mxu0 0
    %1077 = vmatpush2.bf16.msra.mxu0 0
    %1078 = vmatprep.mubr.bf16.mxu0 0
    %1079 = vmatmul.mubr.bf16.gmra.mxu0 %v1042
    %v1080 = vpop.f32.mrf.mxu0
    %v1081 = vadd.f32 %v1020, %v1080
    %v1082 = vpop.f32.mrf.mxu0
    %v1083 = vpop.f32.mrf.mxu0
    %v1084 = vadd.f32 %v1023, %v1083
    %v1085 = vpop.f32.mrf.mxu0
    %1086 = vmatprep.mubr.bf16.mxu0 0
    %1087 = vmatmul.mubr.bf16.gmra.mxu0 %v1043
    %v1088 = vpop.f32.mrf.mxu0
    %v1089 = vadd.f32 %v1028, %v1088
    %v1090 = vpop.f32.mrf.mxu0
    %v1091 = vpop.f32.mrf.mxu0
    %v1092 = vadd.f32 %v1031, %v1091
    %v1093 = vpop.f32.mrf.mxu0
    %1094 = vdwg.mxu0
    %s1095 = scalar_lea.vmem [#allocation2], 176
    %v1096 = vld [vmem:[%s1095] sm:$0xf]
    %v1097 = vld [vmem:[%s1095 + $0x4] sm:$0xf]
    %v1098 = vld [vmem:[%s1095 + $0x8] sm:$0xf]
    %v1099 = vld [vmem:[%s1095 + $0xc] sm:$0xf]
    %v1104 = vunpack.c.l.b16 %v1096
    %v1105 = vunpack.c.l.b16 %v1097
    %v1106 = vunpack.c.l.b16 %v1098
    %v1107 = vunpack.c.l.b16 %v1099
    %v1108 = vpack.c.b16 %v1105, %v1104
    %v1109 = vpack.c.b16 %v1107, %v1106
    %1112 = vmatprep.subr.bf16.mxu0 0
    %1113 = vmatpush1.bf16.msra.mxu0 %v100
    %1114 = vmatprep.subr.bf16.mxu0 0
    %1115 = vmatpush1.bf16.msra.mxu0 %v99
    %1116 = vmatprep.subr.bf16.mxu0 0
    %1117 = vmatpush1.bf16.msra.mxu0 %v98
    %1118 = vmatprep.subr.bf16.mxu0 0
    %1119 = vmatpush1.bf16.msra.mxu0 %v97
    %1120 = vmatprep.subr.bf16.mxu0 0
    %1121 = vmatpush1.bf16.msra.mxu0 %v96
    %1122 = vmatprep.subr.bf16.mxu0 0
    %1123 = vmatpush1.bf16.msra.mxu0 %v95
    %1124 = vmatprep.subr.bf16.mxu0 0
    %1125 = vmatpush1.bf16.msra.mxu0 %v94
    %1126 = vmatprep.subr.bf16.mxu0 0
    %1127 = vmatpush1.bf16.msra.mxu0 %v93
    %1128 = vmatprep.subr.bf16.mxu0 0
    %1129 = vmatpush2.bf16.msra.mxu0 0
    %1130 = vmatprep.subr.bf16.mxu0 0
    %1131 = vmatpush2.bf16.msra.mxu0 0
    %1132 = vmatprep.subr.bf16.mxu0 0
    %1133 = vmatpush2.bf16.msra.mxu0 0
    %1134 = vmatprep.subr.bf16.mxu0 0
    %1135 = vmatpush2.bf16.msra.mxu0 0
    %1136 = vmatprep.subr.bf16.mxu0 0
    %1137 = vmatpush2.bf16.msra.mxu0 0
    %1138 = vmatprep.subr.bf16.mxu0 0
    %1139 = vmatpush2.bf16.msra.mxu0 0
    %1140 = vmatprep.subr.bf16.mxu0 0
    %1141 = vmatpush2.bf16.msra.mxu0 0
    %1142 = vmatprep.subr.bf16.mxu0 0
    %1143 = vmatpush2.bf16.msra.mxu0 0
    %1144 = vmatprep.mubr.bf16.mxu0 0
    %1145 = vmatmul.mubr.bf16.gmra.mxu0 %v1108
    %v1146 = vpop.f32.mrf.mxu0
    %v1147 = vadd.f32 0.0, %v1146
    %v1148 = vpop.f32.mrf.mxu0
    %v1149 = vpop.f32.mrf.mxu0
    %v1150 = vadd.f32 0.0, %v1149
    %v1151 = vpop.f32.mrf.mxu0
    %1152 = vmatprep.mubr.bf16.mxu0 0
    %1153 = vmatmul.mubr.bf16.gmra.mxu0 %v1109
    %v1154 = vpop.f32.mrf.mxu0
    %v1155 = vadd.f32 0.0, %v1154
    %v1156 = vpop.f32.mrf.mxu0
    %v1157 = vpop.f32.mrf.mxu0
    %v1158 = vadd.f32 0.0, %v1157
    %v1159 = vpop.f32.mrf.mxu0
    %1160 = vdwg.mxu0
    %v1161 = vadd.f32 %v1081, %v1147
    %v1162 = vadd.f32 %v1084, %v1150
    %v1163 = vadd.f32 %v1089, %v1155
    %v1164 = vadd.f32 %v1092, %v1158
    %v1165 = vld [vmem:[#allocation5 + $0x3] sm:$0x1]
    %v1166 = vlaneseq
    %v1167 = vshrl.u32 %v1166, 7
    %v1168 = vsub.s32 0, %v1167
    %v1169 = vrot.slane %v1165, %v1168
    %vm1170 = vcmp.eq.s32.totalorder %v40, %v1169
    %vm1171 = vcmp.eq.s32.totalorder %v41, %v1169
    %vm1172 = vcmp.eq.s32.totalorder %v42, %v1169
    %vm1173 = vcmp.eq.s32.totalorder %v43, %v1169
    %vm1174 = vcmp.eq.s32.totalorder %v44, %v1169
    %vm1175 = vcmp.eq.s32.totalorder %v45, %v1169
    %vm1176 = vcmp.eq.s32.totalorder %v46, %v1169
    %vm1177 = vcmp.eq.s32.totalorder %v47, %v1169
    %vm1178 = vcmp.eq.s32.totalorder %v48, %v1169
    %vm1179 = vcmp.eq.s32.totalorder %v49, %v1169
    %vm1180 = vcmp.eq.s32.totalorder %v50, %v1169
    %vm1181 = vcmp.eq.s32.totalorder %v51, %v1169
    %vm1182 = vcmp.eq.s32.totalorder %v52, %v1169
    %vm1183 = vcmp.eq.s32.totalorder %v53, %v1169
    %vm1184 = vcmp.eq.s32.totalorder %v54, %v1169
    %vm1185 = vcmp.eq.s32.totalorder %v55, %v1169
    %v1186 = vsel %vm1170, 1.0, 0.0
    %v1187 = vsel %vm1171, 1.0, 0.0
    %v1188 = vsel %vm1172, 1.0, 0.0
    %v1189 = vsel %vm1173, 1.0, 0.0
    %v1190 = vsel %vm1174, 1.0, 0.0
    %v1191 = vsel %vm1175, 1.0, 0.0
    %v1192 = vsel %vm1176, 1.0, 0.0
    %v1193 = vsel %vm1177, 1.0, 0.0
    %v1194 = vsel %vm1178, 1.0, 0.0
    %v1195 = vsel %vm1179, 1.0, 0.0
    %v1196 = vsel %vm1180, 1.0, 0.0
    %v1197 = vsel %vm1181, 1.0, 0.0
    %v1198 = vsel %vm1182, 1.0, 0.0
    %v1199 = vsel %vm1183, 1.0, 0.0
    %v1200 = vsel %vm1184, 1.0, 0.0
    %v1201 = vsel %vm1185, 1.0, 0.0
    %v1202 = vpack.c.bf16 %v1187, %v1186
    %v1203 = vpack.c.bf16 %v1189, %v1188
    %v1204 = vpack.c.bf16 %v1191, %v1190
    %v1205 = vpack.c.bf16 %v1193, %v1192
    %v1206 = vpack.c.bf16 %v1195, %v1194
    %v1207 = vpack.c.bf16 %v1197, %v1196
    %v1208 = vpack.c.bf16 %v1199, %v1198
    %v1209 = vpack.c.bf16 %v1201, %v1200
    %1210 = vmatprep.subr.bf16.mxu0 0
    %1211 = vmatpush1.bf16.msra.mxu0 %v1209
    %1212 = vmatprep.subr.bf16.mxu0 0
    %1213 = vmatpush1.bf16.msra.mxu0 %v1208
    %1214 = vmatprep.subr.bf16.mxu0 0
    %1215 = vmatpush1.bf16.msra.mxu0 %v1207
    %1216 = vmatprep.subr.bf16.mxu0 0
    %1217 = vmatpush1.bf16.msra.mxu0 %v1206
    %1218 = vmatprep.subr.bf16.mxu0 0
    %1219 = vmatpush1.bf16.msra.mxu0 %v1205
    %1220 = vmatprep.subr.bf16.mxu0 0
    %1221 = vmatpush1.bf16.msra.mxu0 %v1204
    %1222 = vmatprep.subr.bf16.mxu0 0
    %1223 = vmatpush1.bf16.msra.mxu0 %v1203
    %1224 = vmatprep.subr.bf16.mxu0 0
    %1225 = vmatpush1.bf16.msra.mxu0 %v1202
    %1226 = vmatprep.subr.bf16.mxu0 0
    %1227 = vmatpush2.bf16.msra.mxu0 0
    %1228 = vmatprep.subr.bf16.mxu0 0
    %1229 = vmatpush2.bf16.msra.mxu0 0
    %1230 = vmatprep.subr.bf16.mxu0 0
    %1231 = vmatpush2.bf16.msra.mxu0 0
    %1232 = vmatprep.subr.bf16.mxu0 0
    %1233 = vmatpush2.bf16.msra.mxu0 0
    %1234 = vmatprep.subr.bf16.mxu0 0
    %1235 = vmatpush2.bf16.msra.mxu0 0
    %1236 = vmatprep.subr.bf16.mxu0 0
    %1237 = vmatpush2.bf16.msra.mxu0 0
    %1238 = vmatprep.subr.bf16.mxu0 0
    %1239 = vmatpush2.bf16.msra.mxu0 0
    %1240 = vmatprep.subr.bf16.mxu0 0
    %1241 = vmatpush2.bf16.msra.mxu0 0
    %1242 = vmatprep.mubr.bf16.mxu0 0
    %1243 = vmatmul.mubr.bf16.gmra.mxu0 %v365
    %v1244 = vpop.f32.mrf.mxu0
    %v1245 = vadd.f32 0.0, %v1244
    %v1246 = vpop.f32.mrf.mxu0
    %v1247 = vpop.f32.mrf.mxu0
    %v1248 = vadd.f32 0.0, %v1247
    %v1249 = vpop.f32.mrf.mxu0
    %1250 = vmatprep.mubr.bf16.mxu0 0
    %1251 = vmatmul.mubr.bf16.gmra.mxu0 %v366
    %v1252 = vpop.f32.mrf.mxu0
    %v1253 = vadd.f32 0.0, %v1252
    %v1254 = vpop.f32.mrf.mxu0
    %v1255 = vpop.f32.mrf.mxu0
    %v1256 = vadd.f32 0.0, %v1255
    %v1257 = vpop.f32.mrf.mxu0
    %1258 = vdwg.mxu0
    %1259 = vmatprep.subr.bf16.mxu0 0
    %1260 = vmatpush1.bf16.msra.mxu0 %v1209
    %1261 = vmatprep.subr.bf16.mxu0 0
    %1262 = vmatpush1.bf16.msra.mxu0 %v1208
    %1263 = vmatprep.subr.bf16.mxu0 0
    %1264 = vmatpush1.bf16.msra.mxu0 %v1207
    %1265 = vmatprep.subr.bf16.mxu0 0
    %1266 = vmatpush1.bf16.msra.mxu0 %v1206
    %1267 = vmatprep.subr.bf16.mxu0 0
    %1268 = vmatpush1.bf16.msra.mxu0 %v1205
    %1269 = vmatprep.subr.bf16.mxu0 0
    %1270 = vmatpush1.bf16.msra.mxu0 %v1204
    %1271 = vmatprep.subr.bf16.mxu0 0
    %1272 = vmatpush1.bf16.msra.mxu0 %v1203
    %1273 = vmatprep.subr.bf16.mxu0 0
    %1274 = vmatpush1.bf16.msra.mxu0 %v1202
    %1275 = vmatprep.subr.bf16.mxu0 0
    %1276 = vmatpush2.bf16.msra.mxu0 0
    %1277 = vmatprep.subr.bf16.mxu0 0
    %1278 = vmatpush2.bf16.msra.mxu0 0
    %1279 = vmatprep.subr.bf16.mxu0 0
    %1280 = vmatpush2.bf16.msra.mxu0 0
    %1281 = vmatprep.subr.bf16.mxu0 0
    %1282 = vmatpush2.bf16.msra.mxu0 0
    %1283 = vmatprep.subr.bf16.mxu0 0
    %1284 = vmatpush2.bf16.msra.mxu0 0
    %1285 = vmatprep.subr.bf16.mxu0 0
    %1286 = vmatpush2.bf16.msra.mxu0 0
    %1287 = vmatprep.subr.bf16.mxu0 0
    %1288 = vmatpush2.bf16.msra.mxu0 0
    %1289 = vmatprep.subr.bf16.mxu0 0
    %1290 = vmatpush2.bf16.msra.mxu0 0
    %1291 = vmatprep.mubr.bf16.mxu0 0
    %1292 = vmatmul.mubr.bf16.gmra.mxu0 %v426
    %v1293 = vpop.f32.mrf.mxu0
    %v1294 = vadd.f32 %v1245, %v1293
    %v1295 = vpop.f32.mrf.mxu0
    %v1296 = vpop.f32.mrf.mxu0
    %v1297 = vadd.f32 %v1248, %v1296
    %v1298 = vpop.f32.mrf.mxu0
    %1299 = vmatprep.mubr.bf16.mxu0 0
    %1300 = vmatmul.mubr.bf16.gmra.mxu0 %v427
    %v1301 = vpop.f32.mrf.mxu0
    %v1302 = vadd.f32 %v1253, %v1301
    %v1303 = vpop.f32.mrf.mxu0
    %v1304 = vpop.f32.mrf.mxu0
    %v1305 = vadd.f32 %v1256, %v1304
    %v1306 = vpop.f32.mrf.mxu0
    %1307 = vdwg.mxu0
    %1308 = vmatprep.subr.bf16.mxu0 0
    %1309 = vmatpush1.bf16.msra.mxu0 %v1209
    %1310 = vmatprep.subr.bf16.mxu0 0
    %1311 = vmatpush1.bf16.msra.mxu0 %v1208
    %1312 = vmatprep.subr.bf16.mxu0 0
    %1313 = vmatpush1.bf16.msra.mxu0 %v1207
    %1314 = vmatprep.subr.bf16.mxu0 0
    %1315 = vmatpush1.bf16.msra.mxu0 %v1206
    %1316 = vmatprep.subr.bf16.mxu0 0
    %1317 = vmatpush1.bf16.msra.mxu0 %v1205
    %1318 = vmatprep.subr.bf16.mxu0 0
    %1319 = vmatpush1.bf16.msra.mxu0 %v1204
    %1320 = vmatprep.subr.bf16.mxu0 0
    %1321 = vmatpush1.bf16.msra.mxu0 %v1203
    %1322 = vmatprep.subr.bf16.mxu0 0
    %1323 = vmatpush1.bf16.msra.mxu0 %v1202
    %1324 = vmatprep.subr.bf16.mxu0 0
    %1325 = vmatpush2.bf16.msra.mxu0 0
    %1326 = vmatprep.subr.bf16.mxu0 0
    %1327 = vmatpush2.bf16.msra.mxu0 0
    %1328 = vmatprep.subr.bf16.mxu0 0
    %1329 = vmatpush2.bf16.msra.mxu0 0
    %1330 = vmatprep.subr.bf16.mxu0 0
    %1331 = vmatpush2.bf16.msra.mxu0 0
    %1332 = vmatprep.subr.bf16.mxu0 0
    %1333 = vmatpush2.bf16.msra.mxu0 0
    %1334 = vmatprep.subr.bf16.mxu0 0
    %1335 = vmatpush2.bf16.msra.mxu0 0
    %1336 = vmatprep.subr.bf16.mxu0 0
    %1337 = vmatpush2.bf16.msra.mxu0 0
    %1338 = vmatprep.subr.bf16.mxu0 0
    %1339 = vmatpush2.bf16.msra.mxu0 0
    %1340 = vmatprep.mubr.bf16.mxu0 0
    %1341 = vmatmul.mubr.bf16.gmra.mxu0 %v492
    %v1342 = vpop.f32.mrf.mxu0
    %v1343 = vadd.f32 0.0, %v1342
    %v1344 = vpop.f32.mrf.mxu0
    %v1345 = vpop.f32.mrf.mxu0
    %v1346 = vadd.f32 0.0, %v1345
    %v1347 = vpop.f32.mrf.mxu0
    %1348 = vmatprep.mubr.bf16.mxu0 0
    %1349 = vmatmul.mubr.bf16.gmra.mxu0 %v493
    %v1350 = vpop.f32.mrf.mxu0
    %v1351 = vadd.f32 0.0, %v1350
    %v1352 = vpop.f32.mrf.mxu0
    %v1353 = vpop.f32.mrf.mxu0
    %v1354 = vadd.f32 0.0, %v1353
    %v1355 = vpop.f32.mrf.mxu0
    %1356 = vdwg.mxu0
    %v1357 = vadd.f32 %v1294, %v1343
    %v1358 = vadd.f32 %v1297, %v1346
    %v1359 = vadd.f32 %v1302, %v1351
    %v1360 = vadd.f32 %v1305, %v1354
    %v1361 = vmul.f32 %v1161, %v1357
    %v1362 = vmul.f32 %v1162, %v1358
    %v1363 = vmul.f32 %v1163, %v1359
    %v1364 = vmul.f32 %v1164, %v1360
    %v1365 = vadd.f32 %v959, %v1361
    %v1366 = vadd.f32 %v960, %v1362
    %v1367 = vadd.f32 %v961, %v1363
    %v1368 = vadd.f32 %v962, %v1364
    %1369 = vmatprep.subr.bf16.mxu0 0
    %1370 = vmatpush1.bf16.msra.mxu0 %v347
    %1371 = vmatprep.subr.bf16.mxu0 0
    %1372 = vmatpush1.bf16.msra.mxu0 %v346
    %1373 = vmatprep.subr.bf16.mxu0 0
    %1374 = vmatpush1.bf16.msra.mxu0 %v345
    %1375 = vmatprep.subr.bf16.mxu0 0
    %1376 = vmatpush1.bf16.msra.mxu0 %v344
    %1377 = vmatprep.subr.bf16.mxu0 0
    %1378 = vmatpush1.bf16.msra.mxu0 %v343
    %1379 = vmatprep.subr.bf16.mxu0 0
    %1380 = vmatpush1.bf16.msra.mxu0 %v342
    %1381 = vmatprep.subr.bf16.mxu0 0
    %1382 = vmatpush1.bf16.msra.mxu0 %v341
    %1383 = vmatprep.subr.bf16.mxu0 0
    %1384 = vmatpush1.bf16.msra.mxu0 %v340
    %1385 = vmatprep.subr.bf16.mxu0 0
    %1386 = vmatpush2.bf16.msra.mxu0 0
    %1387 = vmatprep.subr.bf16.mxu0 0
    %1388 = vmatpush2.bf16.msra.mxu0 0
    %1389 = vmatprep.subr.bf16.mxu0 0
    %1390 = vmatpush2.bf16.msra.mxu0 0
    %1391 = vmatprep.subr.bf16.mxu0 0
    %1392 = vmatpush2.bf16.msra.mxu0 0
    %1393 = vmatprep.subr.bf16.mxu0 0
    %1394 = vmatpush2.bf16.msra.mxu0 0
    %1395 = vmatprep.subr.bf16.mxu0 0
    %1396 = vmatpush2.bf16.msra.mxu0 0
    %1397 = vmatprep.subr.bf16.mxu0 0
    %1398 = vmatpush2.bf16.msra.mxu0 0
    %1399 = vmatprep.subr.bf16.mxu0 0
    %1400 = vmatpush2.bf16.msra.mxu0 0
    %1401 = vmatprep.mubr.bf16.mxu0 0
    %1402 = vmatmul.mubr.bf16.gmra.mxu0 %v575
    %v1403 = vpop.f32.mrf.mxu0
    %v1404 = vadd.f32 0.0, %v1403
    %v1405 = vpop.f32.mrf.mxu0
    %v1406 = vpop.f32.mrf.mxu0
    %v1407 = vadd.f32 0.0, %v1406
    %v1408 = vpop.f32.mrf.mxu0
    %1409 = vmatprep.mubr.bf16.mxu0 0
    %1410 = vmatmul.mubr.bf16.gmra.mxu0 %v576
    %v1411 = vpop.f32.mrf.mxu0
    %v1412 = vadd.f32 0.0, %v1411
    %v1413 = vpop.f32.mrf.mxu0
    %v1414 = vpop.f32.mrf.mxu0
    %v1415 = vadd.f32 0.0, %v1414
    %v1416 = vpop.f32.mrf.mxu0
    %1417 = vdwg.mxu0
    %1418 = vmatprep.subr.bf16.mxu0 0
    %1419 = vmatpush1.bf16.msra.mxu0 %v347
    %1420 = vmatprep.subr.bf16.mxu0 0
    %1421 = vmatpush1.bf16.msra.mxu0 %v346
    %1422 = vmatprep.subr.bf16.mxu0 0
    %1423 = vmatpush1.bf16.msra.mxu0 %v345
    %1424 = vmatprep.subr.bf16.mxu0 0
    %1425 = vmatpush1.bf16.msra.mxu0 %v344
    %1426 = vmatprep.subr.bf16.mxu0 0
    %1427 = vmatpush1.bf16.msra.mxu0 %v343
    %1428 = vmatprep.subr.bf16.mxu0 0
    %1429 = vmatpush1.bf16.msra.mxu0 %v342
    %1430 = vmatprep.subr.bf16.mxu0 0
    %1431 = vmatpush1.bf16.msra.mxu0 %v341
    %1432 = vmatprep.subr.bf16.mxu0 0
    %1433 = vmatpush1.bf16.msra.mxu0 %v340
    %1434 = vmatprep.subr.bf16.mxu0 0
    %1435 = vmatpush2.bf16.msra.mxu0 0
    %1436 = vmatprep.subr.bf16.mxu0 0
    %1437 = vmatpush2.bf16.msra.mxu0 0
    %1438 = vmatprep.subr.bf16.mxu0 0
    %1439 = vmatpush2.bf16.msra.mxu0 0
    %1440 = vmatprep.subr.bf16.mxu0 0
    %1441 = vmatpush2.bf16.msra.mxu0 0
    %1442 = vmatprep.subr.bf16.mxu0 0
    %1443 = vmatpush2.bf16.msra.mxu0 0
    %1444 = vmatprep.subr.bf16.mxu0 0
    %1445 = vmatpush2.bf16.msra.mxu0 0
    %1446 = vmatprep.subr.bf16.mxu0 0
    %1447 = vmatpush2.bf16.msra.mxu0 0
    %1448 = vmatprep.subr.bf16.mxu0 0
    %1449 = vmatpush2.bf16.msra.mxu0 0
    %1450 = vmatprep.mubr.bf16.mxu0 0
    %1451 = vmatmul.mubr.bf16.gmra.mxu0 %v636
    %v1452 = vpop.f32.mrf.mxu0
    %v1453 = vadd.f32 %v1404, %v1452
    %v1454 = vpop.f32.mrf.mxu0
    %v1455 = vpop.f32.mrf.mxu0
    %v1456 = vadd.f32 %v1407, %v1455
    %v1457 = vpop.f32.mrf.mxu0
    %1458 = vmatprep.mubr.bf16.mxu0 0
    %1459 = vmatmul.mubr.bf16.gmra.mxu0 %v637
    %v1460 = vpop.f32.mrf.mxu0
    %v1461 = vadd.f32 %v1412, %v1460
    %v1462 = vpop.f32.mrf.mxu0
    %v1463 = vpop.f32.mrf.mxu0
    %v1464 = vadd.f32 %v1415, %v1463
    %v1465 = vpop.f32.mrf.mxu0
    %1466 = vdwg.mxu0
    %1467 = vmatprep.subr.bf16.mxu0 0
    %1468 = vmatpush1.bf16.msra.mxu0 %v347
    %1469 = vmatprep.subr.bf16.mxu0 0
    %1470 = vmatpush1.bf16.msra.mxu0 %v346
    %1471 = vmatprep.subr.bf16.mxu0 0
    %1472 = vmatpush1.bf16.msra.mxu0 %v345
    %1473 = vmatprep.subr.bf16.mxu0 0
    %1474 = vmatpush1.bf16.msra.mxu0 %v344
    %1475 = vmatprep.subr.bf16.mxu0 0
    %1476 = vmatpush1.bf16.msra.mxu0 %v343
    %1477 = vmatprep.subr.bf16.mxu0 0
    %1478 = vmatpush1.bf16.msra.mxu0 %v342
    %1479 = vmatprep.subr.bf16.mxu0 0
    %1480 = vmatpush1.bf16.msra.mxu0 %v341
    %1481 = vmatprep.subr.bf16.mxu0 0
    %1482 = vmatpush1.bf16.msra.mxu0 %v340
    %1483 = vmatprep.subr.bf16.mxu0 0
    %1484 = vmatpush2.bf16.msra.mxu0 0
    %1485 = vmatprep.subr.bf16.mxu0 0
    %1486 = vmatpush2.bf16.msra.mxu0 0
    %1487 = vmatprep.subr.bf16.mxu0 0
    %1488 = vmatpush2.bf16.msra.mxu0 0
    %1489 = vmatprep.subr.bf16.mxu0 0
    %1490 = vmatpush2.bf16.msra.mxu0 0
    %1491 = vmatprep.subr.bf16.mxu0 0
    %1492 = vmatpush2.bf16.msra.mxu0 0
    %1493 = vmatprep.subr.bf16.mxu0 0
    %1494 = vmatpush2.bf16.msra.mxu0 0
    %1495 = vmatprep.subr.bf16.mxu0 0
    %1496 = vmatpush2.bf16.msra.mxu0 0
    %1497 = vmatprep.subr.bf16.mxu0 0
    %1498 = vmatpush2.bf16.msra.mxu0 0
    %1499 = vmatprep.mubr.bf16.mxu0 0
    %1500 = vmatmul.mubr.bf16.gmra.mxu0 %v702
    %v1501 = vpop.f32.mrf.mxu0
    %v1502 = vadd.f32 0.0, %v1501
    %v1503 = vpop.f32.mrf.mxu0
    %v1504 = vpop.f32.mrf.mxu0
    %v1505 = vadd.f32 0.0, %v1504
    %v1506 = vpop.f32.mrf.mxu0
    %1507 = vmatprep.mubr.bf16.mxu0 0
    %1508 = vmatmul.mubr.bf16.gmra.mxu0 %v703
    %v1509 = vpop.f32.mrf.mxu0
    %v1510 = vadd.f32 0.0, %v1509
    %v1511 = vpop.f32.mrf.mxu0
    %v1512 = vpop.f32.mrf.mxu0
    %v1513 = vadd.f32 0.0, %v1512
    %v1514 = vpop.f32.mrf.mxu0
    %1515 = vdwg.mxu0
    %v1516 = vadd.f32 %v1453, %v1502
    %v1517 = vadd.f32 %v1456, %v1505
    %v1518 = vadd.f32 %v1461, %v1510
    %v1519 = vadd.f32 %v1464, %v1513
    %1520 = vmatprep.subr.bf16.mxu0 0
    %1521 = vmatpush1.bf16.msra.mxu0 %v803
    %1522 = vmatprep.subr.bf16.mxu0 0
    %1523 = vmatpush1.bf16.msra.mxu0 %v802
    %1524 = vmatprep.subr.bf16.mxu0 0
    %1525 = vmatpush1.bf16.msra.mxu0 %v801
    %1526 = vmatprep.subr.bf16.mxu0 0
    %1527 = vmatpush1.bf16.msra.mxu0 %v800
    %1528 = vmatprep.subr.bf16.mxu0 0
    %1529 = vmatpush1.bf16.msra.mxu0 %v799
    %1530 = vmatprep.subr.bf16.mxu0 0
    %1531 = vmatpush1.bf16.msra.mxu0 %v798
    %1532 = vmatprep.subr.bf16.mxu0 0
    %1533 = vmatpush1.bf16.msra.mxu0 %v797
    %1534 = vmatprep.subr.bf16.mxu0 0
    %1535 = vmatpush1.bf16.msra.mxu0 %v796
    %1536 = vmatprep.subr.bf16.mxu0 0
    %1537 = vmatpush2.bf16.msra.mxu0 0
    %1538 = vmatprep.subr.bf16.mxu0 0
    %1539 = vmatpush2.bf16.msra.mxu0 0
    %1540 = vmatprep.subr.bf16.mxu0 0
    %1541 = vmatpush2.bf16.msra.mxu0 0
    %1542 = vmatprep.subr.bf16.mxu0 0
    %1543 = vmatpush2.bf16.msra.mxu0 0
    %1544 = vmatprep.subr.bf16.mxu0 0
    %1545 = vmatpush2.bf16.msra.mxu0 0
    %1546 = vmatprep.subr.bf16.mxu0 0
    %1547 = vmatpush2.bf16.msra.mxu0 0
    %1548 = vmatprep.subr.bf16.mxu0 0
    %1549 = vmatpush2.bf16.msra.mxu0 0
    %1550 = vmatprep.subr.bf16.mxu0 0
    %1551 = vmatpush2.bf16.msra.mxu0 0
    %1552 = vmatprep.mubr.bf16.mxu0 0
    %1553 = vmatmul.mubr.bf16.gmra.mxu0 %v119
    %v1554 = vpop.f32.mrf.mxu0
    %v1555 = vadd.f32 0.0, %v1554
    %v1556 = vpop.f32.mrf.mxu0
    %v1557 = vpop.f32.mrf.mxu0
    %v1558 = vadd.f32 0.0, %v1557
    %v1559 = vpop.f32.mrf.mxu0
    %1560 = vmatprep.mubr.bf16.mxu0 0
    %1561 = vmatmul.mubr.bf16.gmra.mxu0 %v120
    %v1562 = vpop.f32.mrf.mxu0
    %v1563 = vadd.f32 0.0, %v1562
    %v1564 = vpop.f32.mrf.mxu0
    %v1565 = vpop.f32.mrf.mxu0
    %v1566 = vadd.f32 0.0, %v1565
    %v1567 = vpop.f32.mrf.mxu0
    %1568 = vdwg.mxu0
    %1569 = vmatprep.subr.bf16.mxu0 0
    %1570 = vmatpush1.bf16.msra.mxu0 %v803
    %1571 = vmatprep.subr.bf16.mxu0 0
    %1572 = vmatpush1.bf16.msra.mxu0 %v802
    %1573 = vmatprep.subr.bf16.mxu0 0
    %1574 = vmatpush1.bf16.msra.mxu0 %v801
    %1575 = vmatprep.subr.bf16.mxu0 0
    %1576 = vmatpush1.bf16.msra.mxu0 %v800
    %1577 = vmatprep.subr.bf16.mxu0 0
    %1578 = vmatpush1.bf16.msra.mxu0 %v799
    %1579 = vmatprep.subr.bf16.mxu0 0
    %1580 = vmatpush1.bf16.msra.mxu0 %v798
    %1581 = vmatprep.subr.bf16.mxu0 0
    %1582 = vmatpush1.bf16.msra.mxu0 %v797
    %1583 = vmatprep.subr.bf16.mxu0 0
    %1584 = vmatpush1.bf16.msra.mxu0 %v796
    %1585 = vmatprep.subr.bf16.mxu0 0
    %1586 = vmatpush2.bf16.msra.mxu0 0
    %1587 = vmatprep.subr.bf16.mxu0 0
    %1588 = vmatpush2.bf16.msra.mxu0 0
    %1589 = vmatprep.subr.bf16.mxu0 0
    %1590 = vmatpush2.bf16.msra.mxu0 0
    %1591 = vmatprep.subr.bf16.mxu0 0
    %1592 = vmatpush2.bf16.msra.mxu0 0
    %1593 = vmatprep.subr.bf16.mxu0 0
    %1594 = vmatpush2.bf16.msra.mxu0 0
    %1595 = vmatprep.subr.bf16.mxu0 0
    %1596 = vmatpush2.bf16.msra.mxu0 0
    %1597 = vmatprep.subr.bf16.mxu0 0
    %1598 = vmatpush2.bf16.msra.mxu0 0
    %1599 = vmatprep.subr.bf16.mxu0 0
    %1600 = vmatpush2.bf16.msra.mxu0 0
    %1601 = vmatprep.mubr.bf16.mxu0 0
    %1602 = vmatmul.mubr.bf16.gmra.mxu0 %v180
    %v1603 = vpop.f32.mrf.mxu0
    %v1604 = vadd.f32 %v1555, %v1603
    %v1605 = vpop.f32.mrf.mxu0
    %v1606 = vpop.f32.mrf.mxu0
    %v1607 = vadd.f32 %v1558, %v1606
    %v1608 = vpop.f32.mrf.mxu0
    %1609 = vmatprep.mubr.bf16.mxu0 0
    %1610 = vmatmul.mubr.bf16.gmra.mxu0 %v181
    %v1611 = vpop.f32.mrf.mxu0
    %v1612 = vadd.f32 %v1563, %v1611
    %v1613 = vpop.f32.mrf.mxu0
    %v1614 = vpop.f32.mrf.mxu0
    %v1615 = vadd.f32 %v1566, %v1614
    %v1616 = vpop.f32.mrf.mxu0
    %1617 = vdwg.mxu0
    %1618 = vmatprep.subr.bf16.mxu0 0
    %1619 = vmatpush1.bf16.msra.mxu0 %v803
    %1620 = vmatprep.subr.bf16.mxu0 0
    %1621 = vmatpush1.bf16.msra.mxu0 %v802
    %1622 = vmatprep.subr.bf16.mxu0 0
    %1623 = vmatpush1.bf16.msra.mxu0 %v801
    %1624 = vmatprep.subr.bf16.mxu0 0
    %1625 = vmatpush1.bf16.msra.mxu0 %v800
    %1626 = vmatprep.subr.bf16.mxu0 0
    %1627 = vmatpush1.bf16.msra.mxu0 %v799
    %1628 = vmatprep.subr.bf16.mxu0 0
    %1629 = vmatpush1.bf16.msra.mxu0 %v798
    %1630 = vmatprep.subr.bf16.mxu0 0
    %1631 = vmatpush1.bf16.msra.mxu0 %v797
    %1632 = vmatprep.subr.bf16.mxu0 0
    %1633 = vmatpush1.bf16.msra.mxu0 %v796
    %1634 = vmatprep.subr.bf16.mxu0 0
    %1635 = vmatpush2.bf16.msra.mxu0 0
    %1636 = vmatprep.subr.bf16.mxu0 0
    %1637 = vmatpush2.bf16.msra.mxu0 0
    %1638 = vmatprep.subr.bf16.mxu0 0
    %1639 = vmatpush2.bf16.msra.mxu0 0
    %1640 = vmatprep.subr.bf16.mxu0 0
    %1641 = vmatpush2.bf16.msra.mxu0 0
    %1642 = vmatprep.subr.bf16.mxu0 0
    %1643 = vmatpush2.bf16.msra.mxu0 0
    %1644 = vmatprep.subr.bf16.mxu0 0
    %1645 = vmatpush2.bf16.msra.mxu0 0
    %1646 = vmatprep.subr.bf16.mxu0 0
    %1647 = vmatpush2.bf16.msra.mxu0 0
    %1648 = vmatprep.subr.bf16.mxu0 0
    %1649 = vmatpush2.bf16.msra.mxu0 0
    %1650 = vmatprep.mubr.bf16.mxu0 0
    %1651 = vmatmul.mubr.bf16.gmra.mxu0 %v246
    %v1652 = vpop.f32.mrf.mxu0
    %v1653 = vadd.f32 0.0, %v1652
    %v1654 = vpop.f32.mrf.mxu0
    %v1655 = vpop.f32.mrf.mxu0
    %v1656 = vadd.f32 0.0, %v1655
    %v1657 = vpop.f32.mrf.mxu0
    %1658 = vmatprep.mubr.bf16.mxu0 0
    %1659 = vmatmul.mubr.bf16.gmra.mxu0 %v247
    %v1660 = vpop.f32.mrf.mxu0
    %v1661 = vadd.f32 0.0, %v1660
    %v1662 = vpop.f32.mrf.mxu0
    %v1663 = vpop.f32.mrf.mxu0
    %v1664 = vadd.f32 0.0, %v1663
    %v1665 = vpop.f32.mrf.mxu0
    %1666 = vdwg.mxu0
    %v1667 = vadd.f32 %v1604, %v1653
    %v1668 = vadd.f32 %v1607, %v1656
    %v1669 = vadd.f32 %v1612, %v1661
    %v1670 = vadd.f32 %v1615, %v1664
    %v1671 = vmul.f32 %v1516, %v1667
    %v1672 = vmul.f32 %v1517, %v1668
    %v1673 = vmul.f32 %v1518, %v1669
    %v1674 = vmul.f32 %v1519, %v1670
    %v1675 = vadd.f32 %v1365, %v1671
    %v1676 = vadd.f32 %v1366, %v1672
    %v1677 = vadd.f32 %v1367, %v1673
    %v1678 = vadd.f32 %v1368, %v1674
    %1679 = vmatprep.subr.bf16.mxu0 0
    %1680 = vmatpush1.bf16.msra.mxu0 %v347
    %1681 = vmatprep.subr.bf16.mxu0 0
    %1682 = vmatpush1.bf16.msra.mxu0 %v346
    %1683 = vmatprep.subr.bf16.mxu0 0
    %1684 = vmatpush1.bf16.msra.mxu0 %v345
    %1685 = vmatprep.subr.bf16.mxu0 0
    %1686 = vmatpush1.bf16.msra.mxu0 %v344
    %1687 = vmatprep.subr.bf16.mxu0 0
    %1688 = vmatpush1.bf16.msra.mxu0 %v343
    %1689 = vmatprep.subr.bf16.mxu0 0
    %1690 = vmatpush1.bf16.msra.mxu0 %v342
    %1691 = vmatprep.subr.bf16.mxu0 0
    %1692 = vmatpush1.bf16.msra.mxu0 %v341
    %1693 = vmatprep.subr.bf16.mxu0 0
    %1694 = vmatpush1.bf16.msra.mxu0 %v340
    %1695 = vmatprep.subr.bf16.mxu0 0
    %1696 = vmatpush2.bf16.msra.mxu0 0
    %1697 = vmatprep.subr.bf16.mxu0 0
    %1698 = vmatpush2.bf16.msra.mxu0 0
    %1699 = vmatprep.subr.bf16.mxu0 0
    %1700 = vmatpush2.bf16.msra.mxu0 0
    %1701 = vmatprep.subr.bf16.mxu0 0
    %1702 = vmatpush2.bf16.msra.mxu0 0
    %1703 = vmatprep.subr.bf16.mxu0 0
    %1704 = vmatpush2.bf16.msra.mxu0 0
    %1705 = vmatprep.subr.bf16.mxu0 0
    %1706 = vmatpush2.bf16.msra.mxu0 0
    %1707 = vmatprep.subr.bf16.mxu0 0
    %1708 = vmatpush2.bf16.msra.mxu0 0
    %1709 = vmatprep.subr.bf16.mxu0 0
    %1710 = vmatpush2.bf16.msra.mxu0 0
    %1711 = vmatprep.mubr.bf16.mxu0 0
    %1712 = vmatmul.mubr.bf16.gmra.mxu0 %v981
    %v1713 = vpop.f32.mrf.mxu0
    %v1714 = vadd.f32 0.0, %v1713
    %v1715 = vpop.f32.mrf.mxu0
    %v1716 = vpop.f32.mrf.mxu0
    %v1717 = vadd.f32 0.0, %v1716
    %v1718 = vpop.f32.mrf.mxu0
    %1719 = vmatprep.mubr.bf16.mxu0 0
    %1720 = vmatmul.mubr.bf16.gmra.mxu0 %v982
    %v1721 = vpop.f32.mrf.mxu0
    %v1722 = vadd.f32 0.0, %v1721
    %v1723 = vpop.f32.mrf.mxu0
    %v1724 = vpop.f32.mrf.mxu0
    %v1725 = vadd.f32 0.0, %v1724
    %v1726 = vpop.f32.mrf.mxu0
    %1727 = vdwg.mxu0
    %1728 = vmatprep.subr.bf16.mxu0 0
    %1729 = vmatpush1.bf16.msra.mxu0 %v347
    %1730 = vmatprep.subr.bf16.mxu0 0
    %1731 = vmatpush1.bf16.msra.mxu0 %v346
    %1732 = vmatprep.subr.bf16.mxu0 0
    %1733 = vmatpush1.bf16.msra.mxu0 %v345
    %1734 = vmatprep.subr.bf16.mxu0 0
    %1735 = vmatpush1.bf16.msra.mxu0 %v344
    %1736 = vmatprep.subr.bf16.mxu0 0
    %1737 = vmatpush1.bf16.msra.mxu0 %v343
    %1738 = vmatprep.subr.bf16.mxu0 0
    %1739 = vmatpush1.bf16.msra.mxu0 %v342
    %1740 = vmatprep.subr.bf16.mxu0 0
    %1741 = vmatpush1.bf16.msra.mxu0 %v341
    %1742 = vmatprep.subr.bf16.mxu0 0
    %1743 = vmatpush1.bf16.msra.mxu0 %v340
    %1744 = vmatprep.subr.bf16.mxu0 0
    %1745 = vmatpush2.bf16.msra.mxu0 0
    %1746 = vmatprep.subr.bf16.mxu0 0
    %1747 = vmatpush2.bf16.msra.mxu0 0
    %1748 = vmatprep.subr.bf16.mxu0 0
    %1749 = vmatpush2.bf16.msra.mxu0 0
    %1750 = vmatprep.subr.bf16.mxu0 0
    %1751 = vmatpush2.bf16.msra.mxu0 0
    %1752 = vmatprep.subr.bf16.mxu0 0
    %1753 = vmatpush2.bf16.msra.mxu0 0
    %1754 = vmatprep.subr.bf16.mxu0 0
    %1755 = vmatpush2.bf16.msra.mxu0 0
    %1756 = vmatprep.subr.bf16.mxu0 0
    %1757 = vmatpush2.bf16.msra.mxu0 0
    %1758 = vmatprep.subr.bf16.mxu0 0
    %1759 = vmatpush2.bf16.msra.mxu0 0
    %1760 = vmatprep.mubr.bf16.mxu0 0
    %1761 = vmatmul.mubr.bf16.gmra.mxu0 %v1042
    %v1762 = vpop.f32.mrf.mxu0
    %v1763 = vadd.f32 %v1714, %v1762
    %v1764 = vpop.f32.mrf.mxu0
    %v1765 = vpop.f32.mrf.mxu0
    %v1766 = vadd.f32 %v1717, %v1765
    %v1767 = vpop.f32.mrf.mxu0
    %1768 = vmatprep.mubr.bf16.mxu0 0
    %1769 = vmatmul.mubr.bf16.gmra.mxu0 %v1043
    %v1770 = vpop.f32.mrf.mxu0
    %v1771 = vadd.f32 %v1722, %v1770
    %v1772 = vpop.f32.mrf.mxu0
    %v1773 = vpop.f32.mrf.mxu0
    %v1774 = vadd.f32 %v1725, %v1773
    %v1775 = vpop.f32.mrf.mxu0
    %1776 = vdwg.mxu0
    %1777 = vmatprep.subr.bf16.mxu0 0
    %1778 = vmatpush1.bf16.msra.mxu0 %v347
    %1779 = vmatprep.subr.bf16.mxu0 0
    %1780 = vmatpush1.bf16.msra.mxu0 %v346
    %1781 = vmatprep.subr.bf16.mxu0 0
    %1782 = vmatpush1.bf16.msra.mxu0 %v345
    %1783 = vmatprep.subr.bf16.mxu0 0
    %1784 = vmatpush1.bf16.msra.mxu0 %v344
    %1785 = vmatprep.subr.bf16.mxu0 0
    %1786 = vmatpush1.bf16.msra.mxu0 %v343
    %1787 = vmatprep.subr.bf16.mxu0 0
    %1788 = vmatpush1.bf16.msra.mxu0 %v342
    %1789 = vmatprep.subr.bf16.mxu0 0
    %1790 = vmatpush1.bf16.msra.mxu0 %v341
    %1791 = vmatprep.subr.bf16.mxu0 0
    %1792 = vmatpush1.bf16.msra.mxu0 %v340
    %1793 = vmatprep.subr.bf16.mxu0 0
    %1794 = vmatpush2.bf16.msra.mxu0 0
    %1795 = vmatprep.subr.bf16.mxu0 0
    %1796 = vmatpush2.bf16.msra.mxu0 0
    %1797 = vmatprep.subr.bf16.mxu0 0
    %1798 = vmatpush2.bf16.msra.mxu0 0
    %1799 = vmatprep.subr.bf16.mxu0 0
    %1800 = vmatpush2.bf16.msra.mxu0 0
    %1801 = vmatprep.subr.bf16.mxu0 0
    %1802 = vmatpush2.bf16.msra.mxu0 0
    %1803 = vmatprep.subr.bf16.mxu0 0
    %1804 = vmatpush2.bf16.msra.mxu0 0
    %1805 = vmatprep.subr.bf16.mxu0 0
    %1806 = vmatpush2.bf16.msra.mxu0 0
    %1807 = vmatprep.subr.bf16.mxu0 0
    %1808 = vmatpush2.bf16.msra.mxu0 0
    %1809 = vmatprep.mubr.bf16.mxu0 0
    %1810 = vmatmul.mubr.bf16.gmra.mxu0 %v1108
    %v1811 = vpop.f32.mrf.mxu0
    %v1812 = vadd.f32 0.0, %v1811
    %v1813 = vpop.f32.mrf.mxu0
    %v1814 = vpop.f32.mrf.mxu0
    %v1815 = vadd.f32 0.0, %v1814
    %v1816 = vpop.f32.mrf.mxu0
    %1817 = vmatprep.mubr.bf16.mxu0 0
    %1818 = vmatmul.mubr.bf16.gmra.mxu0 %v1109
    %v1819 = vpop.f32.mrf.mxu0
    %v1820 = vadd.f32 0.0, %v1819
    %v1821 = vpop.f32.mrf.mxu0
    %v1822 = vpop.f32.mrf.mxu0
    %v1823 = vadd.f32 0.0, %v1822
    %v1824 = vpop.f32.mrf.mxu0
    %1825 = vdwg.mxu0
    %v1826 = vadd.f32 %v1763, %v1812
    %v1827 = vadd.f32 %v1766, %v1815
    %v1828 = vadd.f32 %v1771, %v1820
    %v1829 = vadd.f32 %v1774, %v1823
    %1830 = vmatprep.subr.bf16.mxu0 0
    %1831 = vmatpush1.bf16.msra.mxu0 %v1209
    %1832 = vmatprep.subr.bf16.mxu0 0
    %1833 = vmatpush1.bf16.msra.mxu0 %v1208
    %1834 = vmatprep.subr.bf16.mxu0 0
    %1835 = vmatpush1.bf16.msra.mxu0 %v1207
    %1836 = vmatprep.subr.bf16.mxu0 0
    %1837 = vmatpush1.bf16.msra.mxu0 %v1206
    %1838 = vmatprep.subr.bf16.mxu0 0
    %1839 = vmatpush1.bf16.msra.mxu0 %v1205
    %1840 = vmatprep.subr.bf16.mxu0 0
    %1841 = vmatpush1.bf16.msra.mxu0 %v1204
    %1842 = vmatprep.subr.bf16.mxu0 0
    %1843 = vmatpush1.bf16.msra.mxu0 %v1203
    %1844 = vmatprep.subr.bf16.mxu0 0
    %1845 = vmatpush1.bf16.msra.mxu0 %v1202
    %1846 = vmatprep.subr.bf16.mxu0 0
    %1847 = vmatpush2.bf16.msra.mxu0 0
    %1848 = vmatprep.subr.bf16.mxu0 0
    %1849 = vmatpush2.bf16.msra.mxu0 0
    %1850 = vmatprep.subr.bf16.mxu0 0
    %1851 = vmatpush2.bf16.msra.mxu0 0
    %1852 = vmatprep.subr.bf16.mxu0 0
    %1853 = vmatpush2.bf16.msra.mxu0 0
    %1854 = vmatprep.subr.bf16.mxu0 0
    %1855 = vmatpush2.bf16.msra.mxu0 0
    %1856 = vmatprep.subr.bf16.mxu0 0
    %1857 = vmatpush2.bf16.msra.mxu0 0
    %1858 = vmatprep.subr.bf16.mxu0 0
    %1859 = vmatpush2.bf16.msra.mxu0 0
    %1860 = vmatprep.subr.bf16.mxu0 0
    %1861 = vmatpush2.bf16.msra.mxu0 0
    %1862 = vmatprep.mubr.bf16.mxu0 0
    %1863 = vmatmul.mubr.bf16.gmra.mxu0 %v119
    %v1864 = vpop.f32.mrf.mxu0
    %v1865 = vadd.f32 0.0, %v1864
    %v1866 = vpop.f32.mrf.mxu0
    %v1867 = vpop.f32.mrf.mxu0
    %v1868 = vadd.f32 0.0, %v1867
    %v1869 = vpop.f32.mrf.mxu0
    %1870 = vmatprep.mubr.bf16.mxu0 0
    %1871 = vmatmul.mubr.bf16.gmra.mxu0 %v120
    %v1872 = vpop.f32.mrf.mxu0
    %v1873 = vadd.f32 0.0, %v1872
    %v1874 = vpop.f32.mrf.mxu0
    %v1875 = vpop.f32.mrf.mxu0
    %v1876 = vadd.f32 0.0, %v1875
    %v1877 = vpop.f32.mrf.mxu0
    %1878 = vdwg.mxu0
    %1879 = vmatprep.subr.bf16.mxu0 0
    %1880 = vmatpush1.bf16.msra.mxu0 %v1209
    %1881 = vmatprep.subr.bf16.mxu0 0
    %1882 = vmatpush1.bf16.msra.mxu0 %v1208
    %1883 = vmatprep.subr.bf16.mxu0 0
    %1884 = vmatpush1.bf16.msra.mxu0 %v1207
    %1885 = vmatprep.subr.bf16.mxu0 0
    %1886 = vmatpush1.bf16.msra.mxu0 %v1206
    %1887 = vmatprep.subr.bf16.mxu0 0
    %1888 = vmatpush1.bf16.msra.mxu0 %v1205
    %1889 = vmatprep.subr.bf16.mxu0 0
    %1890 = vmatpush1.bf16.msra.mxu0 %v1204
    %1891 = vmatprep.subr.bf16.mxu0 0
    %1892 = vmatpush1.bf16.msra.mxu0 %v1203
    %1893 = vmatprep.subr.bf16.mxu0 0
    %1894 = vmatpush1.bf16.msra.mxu0 %v1202
    %1895 = vmatprep.subr.bf16.mxu0 0
    %1896 = vmatpush2.bf16.msra.mxu0 0
    %1897 = vmatprep.subr.bf16.mxu0 0
    %1898 = vmatpush2.bf16.msra.mxu0 0
    %1899 = vmatprep.subr.bf16.mxu0 0
    %1900 = vmatpush2.bf16.msra.mxu0 0
    %1901 = vmatprep.subr.bf16.mxu0 0
    %1902 = vmatpush2.bf16.msra.mxu0 0
    %1903 = vmatprep.subr.bf16.mxu0 0
    %1904 = vmatpush2.bf16.msra.mxu0 0
    %1905 = vmatprep.subr.bf16.mxu0 0
    %1906 = vmatpush2.bf16.msra.mxu0 0
    %1907 = vmatprep.subr.bf16.mxu0 0
    %1908 = vmatpush2.bf16.msra.mxu0 0
    %1909 = vmatprep.subr.bf16.mxu0 0
    %1910 = vmatpush2.bf16.msra.mxu0 0
    %1911 = vmatprep.mubr.bf16.mxu0 0
    %1912 = vmatmul.mubr.bf16.gmra.mxu0 %v180
    %v1913 = vpop.f32.mrf.mxu0
    %v1914 = vadd.f32 %v1865, %v1913
    %v1915 = vpop.f32.mrf.mxu0
    %v1916 = vpop.f32.mrf.mxu0
    %v1917 = vadd.f32 %v1868, %v1916
    %v1918 = vpop.f32.mrf.mxu0
    %1919 = vmatprep.mubr.bf16.mxu0 0
    %1920 = vmatmul.mubr.bf16.gmra.mxu0 %v181
    %v1921 = vpop.f32.mrf.mxu0
    %v1922 = vadd.f32 %v1873, %v1921
    %v1923 = vpop.f32.mrf.mxu0
    %v1924 = vpop.f32.mrf.mxu0
    %v1925 = vadd.f32 %v1876, %v1924
    %v1926 = vpop.f32.mrf.mxu0
    %1927 = vdwg.mxu0
    %1928 = vmatprep.subr.bf16.mxu0 0
    %1929 = vmatpush1.bf16.msra.mxu0 %v1209
    %1930 = vmatprep.subr.bf16.mxu0 0
    %1931 = vmatpush1.bf16.msra.mxu0 %v1208
    %1932 = vmatprep.subr.bf16.mxu0 0
    %1933 = vmatpush1.bf16.msra.mxu0 %v1207
    %1934 = vmatprep.subr.bf16.mxu0 0
    %1935 = vmatpush1.bf16.msra.mxu0 %v1206
    %1936 = vmatprep.subr.bf16.mxu0 0
    %1937 = vmatpush1.bf16.msra.mxu0 %v1205
    %1938 = vmatprep.subr.bf16.mxu0 0
    %1939 = vmatpush1.bf16.msra.mxu0 %v1204
    %1940 = vmatprep.subr.bf16.mxu0 0
    %1941 = vmatpush1.bf16.msra.mxu0 %v1203
    %1942 = vmatprep.subr.bf16.mxu0 0
    %1943 = vmatpush1.bf16.msra.mxu0 %v1202
    %1944 = vmatprep.subr.bf16.mxu0 0
    %1945 = vmatpush2.bf16.msra.mxu0 0
    %1946 = vmatprep.subr.bf16.mxu0 0
    %1947 = vmatpush2.bf16.msra.mxu0 0
    %1948 = vmatprep.subr.bf16.mxu0 0
    %1949 = vmatpush2.bf16.msra.mxu0 0
    %1950 = vmatprep.subr.bf16.mxu0 0
    %1951 = vmatpush2.bf16.msra.mxu0 0
    %1952 = vmatprep.subr.bf16.mxu0 0
    %1953 = vmatpush2.bf16.msra.mxu0 0
    %1954 = vmatprep.subr.bf16.mxu0 0
    %1955 = vmatpush2.bf16.msra.mxu0 0
    %1956 = vmatprep.subr.bf16.mxu0 0
    %1957 = vmatpush2.bf16.msra.mxu0 0
    %1958 = vmatprep.subr.bf16.mxu0 0
    %1959 = vmatpush2.bf16.msra.mxu0 0
    %1960 = vmatprep.mubr.bf16.mxu0 0
    %1961 = vmatmul.mubr.bf16.gmra.mxu0 %v246
    %v1962 = vpop.f32.mrf.mxu0
    %v1963 = vadd.f32 0.0, %v1962
    %v1964 = vpop.f32.mrf.mxu0
    %v1965 = vpop.f32.mrf.mxu0
    %v1966 = vadd.f32 0.0, %v1965
    %v1967 = vpop.f32.mrf.mxu0
    %1968 = vmatprep.mubr.bf16.mxu0 0
    %1969 = vmatmul.mubr.bf16.gmra.mxu0 %v247
    %v1970 = vpop.f32.mrf.mxu0
    %v1971 = vadd.f32 0.0, %v1970
    %v1972 = vpop.f32.mrf.mxu0
    %v1973 = vpop.f32.mrf.mxu0
    %v1974 = vadd.f32 0.0, %v1973
    %v1975 = vpop.f32.mrf.mxu0
    %1976 = vdwg.mxu0
    %v1977 = vadd.f32 %v1914, %v1963
    %v1978 = vadd.f32 %v1917, %v1966
    %v1979 = vadd.f32 %v1922, %v1971
    %v1980 = vadd.f32 %v1925, %v1974
    %v1981 = vmul.f32 %v1826, %v1977
    %v1982 = vmul.f32 %v1827, %v1978
    %v1983 = vmul.f32 %v1828, %v1979
    %v1984 = vmul.f32 %v1829, %v1980
    %v1985 = vadd.f32 %v1675, %v1981
    %v1986 = vadd.f32 %v1676, %v1982
    %v1987 = vadd.f32 %v1677, %v1983
    %v1988 = vadd.f32 %v1678, %v1984
    %1989 = vmatprep.subr.bf16.mxu0 0
    %1990 = vmatpush1.bf16.msra.mxu0 %v803
    %1991 = vmatprep.subr.bf16.mxu0 0
    %1992 = vmatpush1.bf16.msra.mxu0 %v802
    %1993 = vmatprep.subr.bf16.mxu0 0
    %1994 = vmatpush1.bf16.msra.mxu0 %v801
    %1995 = vmatprep.subr.bf16.mxu0 0
    %1996 = vmatpush1.bf16.msra.mxu0 %v800
    %1997 = vmatprep.subr.bf16.mxu0 0
    %1998 = vmatpush1.bf16.msra.mxu0 %v799
    %1999 = vmatprep.subr.bf16.mxu0 0
    %2000 = vmatpush1.bf16.msra.mxu0 %v798
    %2001 = vmatprep.subr.bf16.mxu0 0
    %2002 = vmatpush1.bf16.msra.mxu0 %v797
    %2003 = vmatprep.subr.bf16.mxu0 0
    %2004 = vmatpush1.bf16.msra.mxu0 %v796
    %2005 = vmatprep.subr.bf16.mxu0 0
    %2006 = vmatpush2.bf16.msra.mxu0 0
    %2007 = vmatprep.subr.bf16.mxu0 0
    %2008 = vmatpush2.bf16.msra.mxu0 0
    %2009 = vmatprep.subr.bf16.mxu0 0
    %2010 = vmatpush2.bf16.msra.mxu0 0
    %2011 = vmatprep.subr.bf16.mxu0 0
    %2012 = vmatpush2.bf16.msra.mxu0 0
    %2013 = vmatprep.subr.bf16.mxu0 0
    %2014 = vmatpush2.bf16.msra.mxu0 0
    %2015 = vmatprep.subr.bf16.mxu0 0
    %2016 = vmatpush2.bf16.msra.mxu0 0
    %2017 = vmatprep.subr.bf16.mxu0 0
    %2018 = vmatpush2.bf16.msra.mxu0 0
    %2019 = vmatprep.subr.bf16.mxu0 0
    %2020 = vmatpush2.bf16.msra.mxu0 0
    %2021 = vmatprep.mubr.bf16.mxu0 0
    %2022 = vmatmul.mubr.bf16.gmra.mxu0 %v981
    %v2023 = vpop.f32.mrf.mxu0
    %v2024 = vadd.f32 0.0, %v2023
    %v2025 = vpop.f32.mrf.mxu0
    %v2026 = vpop.f32.mrf.mxu0
    %v2027 = vadd.f32 0.0, %v2026
    %v2028 = vpop.f32.mrf.mxu0
    %2029 = vmatprep.mubr.bf16.mxu0 0
    %2030 = vmatmul.mubr.bf16.gmra.mxu0 %v982
    %v2031 = vpop.f32.mrf.mxu0
    %v2032 = vadd.f32 0.0, %v2031
    %v2033 = vpop.f32.mrf.mxu0
    %v2034 = vpop.f32.mrf.mxu0
    %v2035 = vadd.f32 0.0, %v2034
    %v2036 = vpop.f32.mrf.mxu0
    %2037 = vdwg.mxu0
    %2038 = vmatprep.subr.bf16.mxu0 0
    %2039 = vmatpush1.bf16.msra.mxu0 %v803
    %2040 = vmatprep.subr.bf16.mxu0 0
    %2041 = vmatpush1.bf16.msra.mxu0 %v802
    %2042 = vmatprep.subr.bf16.mxu0 0
    %2043 = vmatpush1.bf16.msra.mxu0 %v801
    %2044 = vmatprep.subr.bf16.mxu0 0
    %2045 = vmatpush1.bf16.msra.mxu0 %v800
    %2046 = vmatprep.subr.bf16.mxu0 0
    %2047 = vmatpush1.bf16.msra.mxu0 %v799
    %2048 = vmatprep.subr.bf16.mxu0 0
    %2049 = vmatpush1.bf16.msra.mxu0 %v798
    %2050 = vmatprep.subr.bf16.mxu0 0
    %2051 = vmatpush1.bf16.msra.mxu0 %v797
    %2052 = vmatprep.subr.bf16.mxu0 0
    %2053 = vmatpush1.bf16.msra.mxu0 %v796
    %2054 = vmatprep.subr.bf16.mxu0 0
    %2055 = vmatpush2.bf16.msra.mxu0 0
    %2056 = vmatprep.subr.bf16.mxu0 0
    %2057 = vmatpush2.bf16.msra.mxu0 0
    %2058 = vmatprep.subr.bf16.mxu0 0
    %2059 = vmatpush2.bf16.msra.mxu0 0
    %2060 = vmatprep.subr.bf16.mxu0 0
    %2061 = vmatpush2.bf16.msra.mxu0 0
    %2062 = vmatprep.subr.bf16.mxu0 0
    %2063 = vmatpush2.bf16.msra.mxu0 0
    %2064 = vmatprep.subr.bf16.mxu0 0
    %2065 = vmatpush2.bf16.msra.mxu0 0
    %2066 = vmatprep.subr.bf16.mxu0 0
    %2067 = vmatpush2.bf16.msra.mxu0 0
    %2068 = vmatprep.subr.bf16.mxu0 0
    %2069 = vmatpush2.bf16.msra.mxu0 0
    %2070 = vmatprep.mubr.bf16.mxu0 0
    %2071 = vmatmul.mubr.bf16.gmra.mxu0 %v1042
    %v2072 = vpop.f32.mrf.mxu0
    %v2073 = vadd.f32 %v2024, %v2072
    %v2074 = vpop.f32.mrf.mxu0
    %v2075 = vpop.f32.mrf.mxu0
    %v2076 = vadd.f32 %v2027, %v2075
    %v2077 = vpop.f32.mrf.mxu0
    %2078 = vmatprep.mubr.bf16.mxu0 0
    %2079 = vmatmul.mubr.bf16.gmra.mxu0 %v1043
    %v2080 = vpop.f32.mrf.mxu0
    %v2081 = vadd.f32 %v2032, %v2080
    %v2082 = vpop.f32.mrf.mxu0
    %v2083 = vpop.f32.mrf.mxu0
    %v2084 = vadd.f32 %v2035, %v2083
    %v2085 = vpop.f32.mrf.mxu0
    %2086 = vdwg.mxu0
    %2087 = vmatprep.subr.bf16.mxu0 0
    %2088 = vmatpush1.bf16.msra.mxu0 %v803
    %2089 = vmatprep.subr.bf16.mxu0 0
    %2090 = vmatpush1.bf16.msra.mxu0 %v802
    %2091 = vmatprep.subr.bf16.mxu0 0
    %2092 = vmatpush1.bf16.msra.mxu0 %v801
    %2093 = vmatprep.subr.bf16.mxu0 0
    %2094 = vmatpush1.bf16.msra.mxu0 %v800
    %2095 = vmatprep.subr.bf16.mxu0 0
    %2096 = vmatpush1.bf16.msra.mxu0 %v799
    %2097 = vmatprep.subr.bf16.mxu0 0
    %2098 = vmatpush1.bf16.msra.mxu0 %v798
    %2099 = vmatprep.subr.bf16.mxu0 0
    %2100 = vmatpush1.bf16.msra.mxu0 %v797
    %2101 = vmatprep.subr.bf16.mxu0 0
    %2102 = vmatpush1.bf16.msra.mxu0 %v796
    %2103 = vmatprep.subr.bf16.mxu0 0
    %2104 = vmatpush2.bf16.msra.mxu0 0
    %2105 = vmatprep.subr.bf16.mxu0 0
    %2106 = vmatpush2.bf16.msra.mxu0 0
    %2107 = vmatprep.subr.bf16.mxu0 0
    %2108 = vmatpush2.bf16.msra.mxu0 0
    %2109 = vmatprep.subr.bf16.mxu0 0
    %2110 = vmatpush2.bf16.msra.mxu0 0
    %2111 = vmatprep.subr.bf16.mxu0 0
    %2112 = vmatpush2.bf16.msra.mxu0 0
    %2113 = vmatprep.subr.bf16.mxu0 0
    %2114 = vmatpush2.bf16.msra.mxu0 0
    %2115 = vmatprep.subr.bf16.mxu0 0
    %2116 = vmatpush2.bf16.msra.mxu0 0
    %2117 = vmatprep.subr.bf16.mxu0 0
    %2118 = vmatpush2.bf16.msra.mxu0 0
    %2119 = vmatprep.mubr.bf16.mxu0 0
    %2120 = vmatmul.mubr.bf16.gmra.mxu0 %v1108
    %v2121 = vpop.f32.mrf.mxu0
    %v2122 = vadd.f32 0.0, %v2121
    %v2123 = vpop.f32.mrf.mxu0
    %v2124 = vpop.f32.mrf.mxu0
    %v2125 = vadd.f32 0.0, %v2124
    %v2126 = vpop.f32.mrf.mxu0
    %2127 = vmatprep.mubr.bf16.mxu0 0
    %2128 = vmatmul.mubr.bf16.gmra.mxu0 %v1109
    %v2129 = vpop.f32.mrf.mxu0
    %v2130 = vadd.f32 0.0, %v2129
    %v2131 = vpop.f32.mrf.mxu0
    %v2132 = vpop.f32.mrf.mxu0
    %v2133 = vadd.f32 0.0, %v2132
    %v2134 = vpop.f32.mrf.mxu0
    %2135 = vdwg.mxu0
    %v2136 = vadd.f32 %v2073, %v2122
    %v2137 = vadd.f32 %v2076, %v2125
    %v2138 = vadd.f32 %v2081, %v2130
    %v2139 = vadd.f32 %v2084, %v2133
    %2140 = vmatprep.subr.bf16.mxu0 0
    %2141 = vmatpush1.bf16.msra.mxu0 %v1209
    %2142 = vmatprep.subr.bf16.mxu0 0
    %2143 = vmatpush1.bf16.msra.mxu0 %v1208
    %2144 = vmatprep.subr.bf16.mxu0 0
    %2145 = vmatpush1.bf16.msra.mxu0 %v1207
    %2146 = vmatprep.subr.bf16.mxu0 0
    %2147 = vmatpush1.bf16.msra.mxu0 %v1206
    %2148 = vmatprep.subr.bf16.mxu0 0
    %2149 = vmatpush1.bf16.msra.mxu0 %v1205
    %2150 = vmatprep.subr.bf16.mxu0 0
    %2151 = vmatpush1.bf16.msra.mxu0 %v1204
    %2152 = vmatprep.subr.bf16.mxu0 0
    %2153 = vmatpush1.bf16.msra.mxu0 %v1203
    %2154 = vmatprep.subr.bf16.mxu0 0
    %2155 = vmatpush1.bf16.msra.mxu0 %v1202
    %2156 = vmatprep.subr.bf16.mxu0 0
    %2157 = vmatpush2.bf16.msra.mxu0 0
    %2158 = vmatprep.subr.bf16.mxu0 0
    %2159 = vmatpush2.bf16.msra.mxu0 0
    %2160 = vmatprep.subr.bf16.mxu0 0
    %2161 = vmatpush2.bf16.msra.mxu0 0
    %2162 = vmatprep.subr.bf16.mxu0 0
    %2163 = vmatpush2.bf16.msra.mxu0 0
    %2164 = vmatprep.subr.bf16.mxu0 0
    %2165 = vmatpush2.bf16.msra.mxu0 0
    %2166 = vmatprep.subr.bf16.mxu0 0
    %2167 = vmatpush2.bf16.msra.mxu0 0
    %2168 = vmatprep.subr.bf16.mxu0 0
    %2169 = vmatpush2.bf16.msra.mxu0 0
    %2170 = vmatprep.subr.bf16.mxu0 0
    %2171 = vmatpush2.bf16.msra.mxu0 0
    %2172 = vmatprep.mubr.bf16.mxu0 0
    %2173 = vmatmul.mubr.bf16.gmra.mxu0 %v575
    %v2174 = vpop.f32.mrf.mxu0
    %v2175 = vadd.f32 0.0, %v2174
    %v2176 = vpop.f32.mrf.mxu0
    %v2177 = vpop.f32.mrf.mxu0
    %v2178 = vadd.f32 0.0, %v2177
    %v2179 = vpop.f32.mrf.mxu0
    %2180 = vmatprep.mubr.bf16.mxu0 0
    %2181 = vmatmul.mubr.bf16.gmra.mxu0 %v576
    %v2182 = vpop.f32.mrf.mxu0
    %v2183 = vadd.f32 0.0, %v2182
    %v2184 = vpop.f32.mrf.mxu0
    %v2185 = vpop.f32.mrf.mxu0
    %v2186 = vadd.f32 0.0, %v2185
    %v2187 = vpop.f32.mrf.mxu0
    %2188 = vdwg.mxu0
    %2189 = vmatprep.subr.bf16.mxu0 0
    %2190 = vmatpush1.bf16.msra.mxu0 %v1209
    %2191 = vmatprep.subr.bf16.mxu0 0
    %2192 = vmatpush1.bf16.msra.mxu0 %v1208
    %2193 = vmatprep.subr.bf16.mxu0 0
    %2194 = vmatpush1.bf16.msra.mxu0 %v1207
    %2195 = vmatprep.subr.bf16.mxu0 0
    %2196 = vmatpush1.bf16.msra.mxu0 %v1206
    %2197 = vmatprep.subr.bf16.mxu0 0
    %2198 = vmatpush1.bf16.msra.mxu0 %v1205
    %2199 = vmatprep.subr.bf16.mxu0 0
    %2200 = vmatpush1.bf16.msra.mxu0 %v1204
    %2201 = vmatprep.subr.bf16.mxu0 0
    %2202 = vmatpush1.bf16.msra.mxu0 %v1203
    %2203 = vmatprep.subr.bf16.mxu0 0
    %2204 = vmatpush1.bf16.msra.mxu0 %v1202
    %2205 = vmatprep.subr.bf16.mxu0 0
    %2206 = vmatpush2.bf16.msra.mxu0 0
    %2207 = vmatprep.subr.bf16.mxu0 0
    %2208 = vmatpush2.bf16.msra.mxu0 0
    %2209 = vmatprep.subr.bf16.mxu0 0
    %2210 = vmatpush2.bf16.msra.mxu0 0
    %2211 = vmatprep.subr.bf16.mxu0 0
    %2212 = vmatpush2.bf16.msra.mxu0 0
    %2213 = vmatprep.subr.bf16.mxu0 0
    %2214 = vmatpush2.bf16.msra.mxu0 0
    %2215 = vmatprep.subr.bf16.mxu0 0
    %2216 = vmatpush2.bf16.msra.mxu0 0
    %2217 = vmatprep.subr.bf16.mxu0 0
    %2218 = vmatpush2.bf16.msra.mxu0 0
    %2219 = vmatprep.subr.bf16.mxu0 0
    %2220 = vmatpush2.bf16.msra.mxu0 0
    %2221 = vmatprep.mubr.bf16.mxu0 0
    %2222 = vmatmul.mubr.bf16.gmra.mxu0 %v636
    %v2223 = vpop.f32.mrf.mxu0
    %v2224 = vadd.f32 %v2175, %v2223
    %v2225 = vpop.f32.mrf.mxu0
    %v2226 = vpop.f32.mrf.mxu0
    %v2227 = vadd.f32 %v2178, %v2226
    %v2228 = vpop.f32.mrf.mxu0
    %2229 = vmatprep.mubr.bf16.mxu0 0
    %2230 = vmatmul.mubr.bf16.gmra.mxu0 %v637
    %v2231 = vpop.f32.mrf.mxu0
    %v2232 = vadd.f32 %v2183, %v2231
    %v2233 = vpop.f32.mrf.mxu0
    %v2234 = vpop.f32.mrf.mxu0
    %v2235 = vadd.f32 %v2186, %v2234
    %v2236 = vpop.f32.mrf.mxu0
    %2237 = vdwg.mxu0
    %2238 = vmatprep.subr.bf16.mxu0 0
    %2239 = vmatpush1.bf16.msra.mxu0 %v1209
    %2240 = vmatprep.subr.bf16.mxu0 0
    %2241 = vmatpush1.bf16.msra.mxu0 %v1208
    %2242 = vmatprep.subr.bf16.mxu0 0
    %2243 = vmatpush1.bf16.msra.mxu0 %v1207
    %2244 = vmatprep.subr.bf16.mxu0 0
    %2245 = vmatpush1.bf16.msra.mxu0 %v1206
    %2246 = vmatprep.subr.bf16.mxu0 0
    %2247 = vmatpush1.bf16.msra.mxu0 %v1205
    %2248 = vmatprep.subr.bf16.mxu0 0
    %2249 = vmatpush1.bf16.msra.mxu0 %v1204
    %2250 = vmatprep.subr.bf16.mxu0 0
    %2251 = vmatpush1.bf16.msra.mxu0 %v1203
    %2252 = vmatprep.subr.bf16.mxu0 0
    %2253 = vmatpush1.bf16.msra.mxu0 %v1202
    %2254 = vmatprep.subr.bf16.mxu0 0
    %2255 = vmatpush2.bf16.msra.mxu0 0
    %2256 = vmatprep.subr.bf16.mxu0 0
    %2257 = vmatpush2.bf16.msra.mxu0 0
    %2258 = vmatprep.subr.bf16.mxu0 0
    %2259 = vmatpush2.bf16.msra.mxu0 0
    %2260 = vmatprep.subr.bf16.mxu0 0
    %2261 = vmatpush2.bf16.msra.mxu0 0
    %2262 = vmatprep.subr.bf16.mxu0 0
    %2263 = vmatpush2.bf16.msra.mxu0 0
    %2264 = vmatprep.subr.bf16.mxu0 0
    %2265 = vmatpush2.bf16.msra.mxu0 0
    %2266 = vmatprep.subr.bf16.mxu0 0
    %2267 = vmatpush2.bf16.msra.mxu0 0
    %2268 = vmatprep.subr.bf16.mxu0 0
    %2269 = vmatpush2.bf16.msra.mxu0 0
    %2270 = vmatprep.mubr.bf16.mxu0 0
    %2271 = vmatmul.mubr.bf16.gmra.mxu0 %v702
    %v2272 = vpop.f32.mrf.mxu0
    %v2273 = vadd.f32 0.0, %v2272
    %v2274 = vpop.f32.mrf.mxu0
    %v2275 = vpop.f32.mrf.mxu0
    %v2276 = vadd.f32 0.0, %v2275
    %v2277 = vpop.f32.mrf.mxu0
    %2278 = vmatprep.mubr.bf16.mxu0 0
    %2279 = vmatmul.mubr.bf16.gmra.mxu0 %v703
    %v2280 = vpop.f32.mrf.mxu0
    %v2281 = vadd.f32 0.0, %v2280
    %v2282 = vpop.f32.mrf.mxu0
    %v2283 = vpop.f32.mrf.mxu0
    %v2284 = vadd.f32 0.0, %v2283
    %v2285 = vpop.f32.mrf.mxu0
    %2286 = vdwg.mxu0
    %v2287 = vadd.f32 %v2224, %v2273
    %v2288 = vadd.f32 %v2227, %v2276
    %v2289 = vadd.f32 %v2232, %v2281
    %v2290 = vadd.f32 %v2235, %v2284
    %v2291 = vmul.f32 %v2136, %v2287
    %v2292 = vmul.f32 %v2137, %v2288
    %v2293 = vmul.f32 %v2138, %v2289
    %v2294 = vmul.f32 %v2139, %v2290
    %v2295 = vadd.f32 %v1985, %v2291
    %v2296 = vadd.f32 %v1986, %v2292
    %v2297 = vadd.f32 %v1987, %v2293
    %v2298 = vadd.f32 %v1988, %v2294
    %v2299 = vadd.f32 %v2295, %v2296
    %v2300 = vadd.f32 %v2299, %v2297
    %v2301 = vadd.f32 %v2300, %v2298
    %v2302 = vrot.slane %v2301, 4
    %v2303 = vadd.f32 %v2301, %v2302
    %v2304 = vrot.slane %v2303, 2
    %v2305 = vadd.f32 %v2303, %v2304
    %v2306 = vrot.slane %v2305, 1
    %v2307 = vadd.f32 %v2305, %v2306
    %v2308 = vsub.f32 0.0, %v2307
    %v2309 = vmul.f32 %v2308, 1.442695
    %v2310 = vpow.pop %v2309
    %v2311 = vadd.f32 %v2310, 1.0
    %v2312 = vrcp.pop %v2311
    %v2313 = vmul.f32 1.0, %v2312
    %2314 = vst [vmem:[#allocation7] sm:$0x1] %v2313
    // Predicated region
    $region18: #{tpu_custom_call.1} parent=1 // pred_check
      _
    $region19: #{tpu_custom_call.1} parent=1 // pred_check_branch
      %2316 = sbr.rel (0) target = $region21
    $region20: #{tpu_custom_call.1} parent=1 // pred_region
      %s2318 = ssub.s32 16, 16
      %2319 = vsyncadd [#allocation4], %s2318
      %s2321 = sshll.u32 [#allocation7], 4
      %s2322 = int_to_ptr.vmem [resolvable:$true] %s2321
      %2324 = dma.vmem_to_hbm [thread:$0]  %s2322, 16, %s2, [#allocation4]
    $region21: #{tpu_custom_call.1} parent=1 // pred_fallthru
      _
    // Predicated region
    $region22: #{tpu_custom_call.1} parent=1 // pred_check
      _
    $region23: #{tpu_custom_call.1} parent=1 // pred_check_branch
      %2326 = sbr.rel (0) target = $region25
    $region24: #{tpu_custom_call.1} parent=1 // pred_region
      %2327 = dma.done [#allocation4], 16
    $region25: #{tpu_custom_call.1} parent=1 // pred_fallthru
      _
    %2328 = vsyncpa [#allocation3], 1
    %2329 = vsyncpa [#allocation6], 1
    %2330 = vsyncpa [#allocation4], 1

</llo_original>
